<compile_context>
chip_gen: v5e
topology: v5e:2x2
jax: 0.10.0
libtpu: 0.0.40
codegen_flags: <defaults>
</compile_context>

<pallas_src>
import jax
import jax.numpy as jnp
from jax.experimental import pallas as pl
from jax.experimental.pallas import tpu as pltpu


# ---------------------------------------------------------------------------
# Fused whole-forward kernel
# ---------------------------------------------------------------------------
def _make_kernel(meta, T, H, V):
    """Builds the fused kernel body for a fixed (static) layer stack `meta`."""

    def kernel(*refs):
        # refs = [x] + per-layer weights + [w_heads, b_heads]  (inputs)
        #        + [hid_out, log_out]                          (outputs)
        #        + [slab_scratch]                              (scratch)
        x_ref = refs[0]
        pos = 1
        layer_refs = []
        for m in meta:
            names = ('w0', 'sc0', 'sh0', 'w1', 'sc1', 'sh1')
            if m['has_down']:
                names = names + ('dw', 'db')
            layer_refs.append({n: refs[pos + j] for j, n in enumerate(names)})
            pos += len(names)
        wh_ref, bh_ref = refs[pos], refs[pos + 1]
        hid_ref, log_ref = refs[pos + 2], refs[pos + 3]
        slab_ref = refs[pos + 4]

        def conv_bn_relu(h, w_ref, sc_ref, sh_ref, dilation, kmax):
            """Fused multi-branch causal dilated Conv1d + BN(eval) + Chomp + ReLU.

            Builds the unfolded slab (T, kmax*cin) in VMEM scratch: tap k's
            column block is the input shifted down by (kmax-1-k)*dilation rows
            with causal zero fill (this IS the left pad + Chomp).  One MXU
            matmul against the tap-major (kmax*cin, cout) weight then produces
            all branches at once (front-zero-padded taps of shorter kernels
            contribute nothing).
            """
            cin = h.shape[1]
            width = kmax * cin
            for k in range(kmax):
                s = (kmax - 1 - k) * dilation        # causal left shift of tap k
                c0 = k * cin
                if s == 0:
                    slab_ref[0:T, c0:c0 + cin] = h
                elif s >= T:
                    slab_ref[0:T, c0:c0 + cin] = jnp.zeros((T, cin), jnp.float32)
                else:
                    slab_ref[0:s, c0:c0 + cin] = jnp.zeros((s, cin), jnp.float32)
                    slab_ref[s:T, c0:c0 + cin] = h[0:T - s, :]
            y = jnp.dot(slab_ref[0:T, 0:width], w_ref[...],
                        preferred_element_type=jnp.float32)
            return jnp.maximum(y * sc_ref[...] + sh_ref[...], 0.0)

        h = x_ref[0].astype(jnp.float32)             # (T, Cin) for this batch row
        for m, r in zip(meta, layer_refs):
            d, kmax = m['dilation'], m['kmax']
            out0 = conv_bn_relu(h, r['w0'], r['sc0'], r['sh0'], d, kmax)
            # dropout0: identity (eval mode)
            out1 = conv_bn_relu(out0, r['w1'], r['sc1'], r['sh1'], d, kmax)
            # dropout1: identity (eval mode)
            if m['has_down']:
                res = jnp.dot(h, r['dw'][...],
                              preferred_element_type=jnp.float32) + r['db'][...]
            else:
                res = h                              # identity residual, no matmul
            h = jnp.maximum(out1 + res, 0.0)

        # Fused heads: one (T, C) @ (C, H+V) matmul, sliced into the two outputs.
        y = jnp.dot(h, wh_ref[...], preferred_element_type=jnp.float32) + bh_ref[...]
        hid_ref[0] = y[:, 0:H].astype(hid_ref.dtype)      # hidden_proj
        log_ref[0] = y[:, H:H + V].astype(log_ref.dtype)  # encoder_output (CTC)

    return kernel


# ---------------------------------------------------------------------------
# Forward (mirrors MultiscaleTCN.forward; consensus _sequence_batch = identity)
# ---------------------------------------------------------------------------
def multiscale_tcn_forward(params, x, lengths=None, B=None):
    del lengths, B                       # _sequence_batch consensus is identity
    Bsz, T, C0 = x.shape
    H, V = params['hidden_size'], params['num_tokens']

    inputs = [x]
    in_specs = [pl.BlockSpec((1, T, C0), lambda b: (b, 0, 0))]

    def add_w(w):                        # small weight: one resident block
        inputs.append(w)
        in_specs.append(pl.BlockSpec(w.shape, lambda b: (0, 0)))

    meta = []
    c_in, c_max, k_max = C0, C0, 1
    for layer in params['layers']:
        c_out = layer['sc0'].shape[-1]
        meta.append({'dilation': layer['dilation'], 'kmax': layer['kmax'],
                     'has_down': layer['has_down']})
        for name in ('w0', 'sc0', 'sh0', 'w1', 'sc1', 'sh1'):
            add_w(layer[name])
        if layer['has_down']:
            add_w(layer['dw'])
            add_w(layer['db'])
        c_max = max(c_max, c_in, c_out)
        k_max = max(k_max, layer['kmax'])
        c_in = c_out
    add_w(params['w_heads'])
    add_w(params['b_heads'])

    hid, logits = pl.pallas_call(
        _make_kernel(meta, T, H, V),
        out_shape=(jax.ShapeDtypeStruct((Bsz, T, H), x.dtype),
                   jax.ShapeDtypeStruct((Bsz, T, V), x.dtype)),
        grid=(Bsz,),
        in_specs=in_specs,
        out_specs=(pl.BlockSpec((1, T, H), lambda b: (b, 0, 0)),
                   pl.BlockSpec((1, T, V), lambda b: (b, 0, 0))),
        scratch_shapes=[pltpu.VMEM((T, k_max * c_max), jnp.float32)],
        compiler_params=pltpu.CompilerParams(
            dimension_semantics=("parallel",)),
    )(*inputs)
    return hid, logits


# ---------------------------------------------------------------------------
# Parameter init (deterministic; shapes follow the PyTorch __init__), pre-fused
# ---------------------------------------------------------------------------
def init_params(key, input_size, num_channels, num_tokens, kernel_sizes):
    """Generates and pre-fuses parameters equivalent to the PyTorch module (eval):

      * per branch: causal dilated Conv1d (+Chomp) -> BatchNorm1d -> ReLU.
        BN defaults (gamma=1, beta=0, mean=0, var=1) and the conv bias are
        folded into per-channel (scale, shift).
      * the nk branches of one branch set are fused into a single conv by
        zero-padding taps at the FRONT to kmax and concatenating on Cout in
        ModuleList (kernel_sizes) order; reshaped tap-major to (kmax*cin, cout).
      * downsample Conv1d(c_in, c_out, 1) exists iff c_in//nk != c_out (as in
        the reference implementation), otherwise the residual is the identity.
      * the two linear heads are fused into one (C, H+V) matrix.
    """
    nk = len(kernel_sizes)
    kmax = max(kernel_sizes)
    eps = 1e-5
    keys = iter(jax.random.split(key, 256))

    def fused_branch_set(c_in, c_out):
        cb = c_out // nk
        ws, scales, shifts = [], [], []
        for K in kernel_sizes:                         # ModuleList order
            w = 0.1 * jax.random.normal(next(keys), (K, c_in, cb), jnp.float32)
            b = 0.1 * jax.random.normal(next(keys), (cb,), jnp.float32)
            gamma = jnp.ones((cb,), jnp.float32)       # BatchNorm1d eval defaults
            beta = jnp.zeros((cb,), jnp.float32)
            rmean = jnp.zeros((cb,), jnp.float32)
            rvar = jnp.ones((cb,), jnp.float32)
            scale = gamma / jnp.sqrt(rvar + eps)
            shift = (b - rmean) * scale + beta         # conv bias folded into shift
            # front-pad taps to kmax so every branch shares one causal conv window
            w = jnp.concatenate(
                [jnp.zeros((kmax - K, c_in, cb), jnp.float32), w], axis=0)
            ws.append(w)
            scales.append(scale)
            shifts.append(shift)
        w_set = jnp.concatenate(ws, axis=-1)           # (kmax, c_in, c_out)
        return (w_set.reshape(kmax * c_in, c_out),     # tap-major rows
                jnp.concatenate(scales).reshape(1, c_out),
                jnp.concatenate(shifts).reshape(1, c_out))

    layers = []
    for i, c_out in enumerate(num_channels):
        c_in = input_size if i == 0 else num_channels[i - 1]
        assert c_out % nk == 0, "num_channels must be divisible by num_kernels"
        w0, sc0, sh0 = fused_branch_set(c_in, c_out)
        w1, sc1, sh1 = fused_branch_set(c_out, c_out)
        layer = {'dilation': 2 ** i, 'kmax': kmax,
                 'w0': w0, 'sc0': sc0, 'sh0': sh0,
                 'w1': w1, 'sc1': sc1, 'sh1': sh1,
                 'has_down': (c_in // nk) != c_out}
        if layer['has_down']:
            layer['dw'] = 0.1 * jax.random.normal(next(keys), (c_in, c_out), jnp.float32)
            layer['db'] = 0.1 * jax.random.normal(next(keys), (1, c_out), jnp.float32)
        layers.append(layer)

    c_last = num_channels[-1]
    w_hid = 0.1 * jax.random.normal(next(keys), (c_last, input_size), jnp.float32)
    b_hid = 0.1 * jax.random.normal(next(keys), (input_size,), jnp.float32)
    w_out = 0.1 * jax.random.normal(next(keys), (c_last, num_tokens), jnp.float32)
    b_out = 0.1 * jax.random.normal(next(keys), (num_tokens,), jnp.float32)
    return {'layers': layers,
            'w_heads': jnp.concatenate([w_hid, w_out], axis=1),          # (C, H+V)
            'b_heads': jnp.concatenate([b_hid, b_out]).reshape(1, input_size + num_tokens),
            'hidden_size': input_size, 'num_tokens': num_tokens}


# ---------------------------------------------------------------------------
if __name__ == "__main__":
    input_size = 16
    num_channels = [16, 16]
    num_tokens = 12
    tcn_options = {'kernel_size': [3, 5]}
    B, T = 2, 8

    key = jax.random.PRNGKey(0)
    kp, kx = jax.random.split(key)
    params = init_params(kp, input_size, num_channels, num_tokens,
                         tcn_options['kernel_size'])
    x = jax.random.normal(kx, (B, T, input_size), jnp.float32)
    lengths = jnp.full((B,), T, jnp.int32)

    fwd = jax.jit(lambda xx, ll: multiscale_tcn_forward(params, xx, ll, B))
    hidden_feats, ctc_logits = fwd(x, lengths)
    jax.block_until_ready((hidden_feats, ctc_logits))

    assert hidden_feats.shape == (B, T, input_size)
    assert ctc_logits.shape == (B, T, num_tokens)
    assert bool(jnp.isfinite(hidden_feats).all())
    assert bool(jnp.isfinite(ctc_logits).all())
    print("KERNEL_OK")
</pallas_src>

<mosaic_0001>
module attributes {stable_mosaic.version = 11 : i64} {
  func.func @kernel(%arg0: i32, %arg1: memref<1x8x16xf32, #tpu.memory_space<vmem>>, %arg2: memref<80x16xf32, #tpu.memory_space<vmem>>, %arg3: memref<1x16xf32, #tpu.memory_space<vmem>>, %arg4: memref<1x16xf32, #tpu.memory_space<vmem>>, %arg5: memref<80x16xf32, #tpu.memory_space<vmem>>, %arg6: memref<1x16xf32, #tpu.memory_space<vmem>>, %arg7: memref<1x16xf32, #tpu.memory_space<vmem>>, %arg8: memref<16x16xf32, #tpu.memory_space<vmem>>, %arg9: memref<1x16xf32, #tpu.memory_space<vmem>>, %arg10: memref<80x16xf32, #tpu.memory_space<vmem>>, %arg11: memref<1x16xf32, #tpu.memory_space<vmem>>, %arg12: memref<1x16xf32, #tpu.memory_space<vmem>>, %arg13: memref<80x16xf32, #tpu.memory_space<vmem>>, %arg14: memref<1x16xf32, #tpu.memory_space<vmem>>, %arg15: memref<1x16xf32, #tpu.memory_space<vmem>>, %arg16: memref<16x16xf32, #tpu.memory_space<vmem>>, %arg17: memref<1x16xf32, #tpu.memory_space<vmem>>, %arg18: memref<16x28xf32, #tpu.memory_space<vmem>>, %arg19: memref<1x28xf32, #tpu.memory_space<vmem>>, %arg20: memref<1x8x16xf32, #tpu.memory_space<vmem>>, %arg21: memref<1x8x12xf32, #tpu.memory_space<vmem>>, %arg22: memref<8x80xf32, #tpu.memory_space<vmem>>) attributes {dimension_semantics = [#tpu.dimension_semantics<parallel>], iteration_bounds = array<i64: 2>, scalar_prefetch = 0 : i64, scratch_operands = 1 : i64, tpu.core_type = #tpu.core_type<tc>, window_params = [{transform_indices = @transform_0, window_bounds = array<i64: 1, 8, 16>}, {pipeline_mode = #tpu.pipeline_mode<synchronous>, transform_indices = @transform_1, window_bounds = array<i64: 80, 16>}, {pipeline_mode = #tpu.pipeline_mode<synchronous>, transform_indices = @transform_2, window_bounds = array<i64: 1, 16>}, {pipeline_mode = #tpu.pipeline_mode<synchronous>, transform_indices = @transform_3, window_bounds = array<i64: 1, 16>}, {pipeline_mode = #tpu.pipeline_mode<synchronous>, transform_indices = @transform_4, window_bounds = array<i64: 80, 16>}, {pipeline_mode = #tpu.pipeline_mode<synchronous>, transform_indices = @transform_5, window_bounds = array<i64: 1, 16>}, {pipeline_mode = #tpu.pipeline_mode<synchronous>, transform_indices = @transform_6, window_bounds = array<i64: 1, 16>}, {pipeline_mode = #tpu.pipeline_mode<synchronous>, transform_indices = @transform_7, window_bounds = array<i64: 16, 16>}, {pipeline_mode = #tpu.pipeline_mode<synchronous>, transform_indices = @transform_8, window_bounds = array<i64: 1, 16>}, {pipeline_mode = #tpu.pipeline_mode<synchronous>, transform_indices = @transform_9, window_bounds = array<i64: 80, 16>}, {pipeline_mode = #tpu.pipeline_mode<synchronous>, transform_indices = @transform_10, window_bounds = array<i64: 1, 16>}, {pipeline_mode = #tpu.pipeline_mode<synchronous>, transform_indices = @transform_11, window_bounds = array<i64: 1, 16>}, {pipeline_mode = #tpu.pipeline_mode<synchronous>, transform_indices = @transform_12, window_bounds = array<i64: 80, 16>}, {pipeline_mode = #tpu.pipeline_mode<synchronous>, transform_indices = @transform_13, window_bounds = array<i64: 1, 16>}, {pipeline_mode = #tpu.pipeline_mode<synchronous>, transform_indices = @transform_14, window_bounds = array<i64: 1, 16>}, {pipeline_mode = #tpu.pipeline_mode<synchronous>, transform_indices = @transform_15, window_bounds = array<i64: 16, 16>}, {pipeline_mode = #tpu.pipeline_mode<synchronous>, transform_indices = @transform_16, window_bounds = array<i64: 1, 16>}, {pipeline_mode = #tpu.pipeline_mode<synchronous>, transform_indices = @transform_17, window_bounds = array<i64: 16, 28>}, {pipeline_mode = #tpu.pipeline_mode<synchronous>, transform_indices = @transform_18, window_bounds = array<i64: 1, 28>}, {transform_indices = @transform_19, window_bounds = array<i64: 1, 8, 16>}, {transform_indices = @transform_20, window_bounds = array<i64: 1, 8, 12>}]} {
    %c0 = arith.constant 0 : index
    %c0_0 = arith.constant 0 : index
    %c0_1 = arith.constant 0 : index
    %0 = vector.load %arg1[%c0, %c0_0, %c0_1] : memref<1x8x16xf32, #tpu.memory_space<vmem>>, vector<1x8x16xf32>
    %1 = vector.shape_cast %0 : vector<1x8x16xf32> to vector<8x16xf32>
    %cst = arith.constant 0.000000e+00 : f32
    %2 = vector.broadcast %cst : f32 to vector<4x16xf32>
    %c0_2 = arith.constant 0 : index
    %c0_3 = arith.constant 0 : index
    %3 = vector.load %arg22[%c0_2, %c0_3] : memref<8x80xf32, #tpu.memory_space<vmem>>, vector<4x16xf32>
    tpu.vector_store %arg22[%c0_2, %c0_3], %2 {strides = array<i32>} : memref<8x80xf32, #tpu.memory_space<vmem>>, vector<4x16xf32>,
    %4 = vector.extract_strided_slice %1 {offsets = [0, 0], sizes = [4, 16], strides = [1, 1]} : vector<8x16xf32> to vector<4x16xf32>
    %c4 = arith.constant 4 : index
    %c0_4 = arith.constant 0 : index
    %5 = vector.load %arg22[%c4, %c0_4] : memref<8x80xf32, #tpu.memory_space<vmem>>, vector<4x16xf32>
    tpu.vector_store %arg22[%c4, %c0_4], %4 {strides = array<i32>} : memref<8x80xf32, #tpu.memory_space<vmem>>, vector<4x16xf32>,
    %cst_5 = arith.constant 0.000000e+00 : f32
    %6 = vector.broadcast %cst_5 : f32 to vector<3x16xf32>
    %c0_6 = arith.constant 0 : index
    %c16 = arith.constant 16 : index
    %7 = vector.load %arg22[%c0_6, %c16] : memref<8x80xf32, #tpu.memory_space<vmem>>, vector<3x16xf32>
    tpu.vector_store %arg22[%c0_6, %c16], %6 {strides = array<i32>} : memref<8x80xf32, #tpu.memory_space<vmem>>, vector<3x16xf32>,
    %8 = vector.extract_strided_slice %1 {offsets = [0, 0], sizes = [5, 16], strides = [1, 1]} : vector<8x16xf32> to vector<5x16xf32>
    %c3 = arith.constant 3 : index
    %c16_7 = arith.constant 16 : index
    %9 = vector.load %arg22[%c3, %c16_7] : memref<8x80xf32, #tpu.memory_space<vmem>>, vector<5x16xf32>
    tpu.vector_store %arg22[%c3, %c16_7], %8 {strides = array<i32>} : memref<8x80xf32, #tpu.memory_space<vmem>>, vector<5x16xf32>,
    %cst_8 = arith.constant 0.000000e+00 : f32
    %10 = vector.broadcast %cst_8 : f32 to vector<2x16xf32>
    %c0_9 = arith.constant 0 : index
    %c32 = arith.constant 32 : index
    %11 = vector.load %arg22[%c0_9, %c32] : memref<8x80xf32, #tpu.memory_space<vmem>>, vector<2x16xf32>
    tpu.vector_store %arg22[%c0_9, %c32], %10 {strides = array<i32>} : memref<8x80xf32, #tpu.memory_space<vmem>>, vector<2x16xf32>,
    %12 = vector.extract_strided_slice %1 {offsets = [0, 0], sizes = [6, 16], strides = [1, 1]} : vector<8x16xf32> to vector<6x16xf32>
    %c2 = arith.constant 2 : index
    %c32_10 = arith.constant 32 : index
    %13 = vector.load %arg22[%c2, %c32_10] : memref<8x80xf32, #tpu.memory_space<vmem>>, vector<6x16xf32>
    tpu.vector_store %arg22[%c2, %c32_10], %12 {strides = array<i32>} : memref<8x80xf32, #tpu.memory_space<vmem>>, vector<6x16xf32>,
    %cst_11 = arith.constant 0.000000e+00 : f32
    %14 = vector.broadcast %cst_11 : f32 to vector<1x16xf32>
    %c0_12 = arith.constant 0 : index
    %c48 = arith.constant 48 : index
    %15 = vector.load %arg22[%c0_12, %c48] : memref<8x80xf32, #tpu.memory_space<vmem>>, vector<1x16xf32>
    tpu.vector_store %arg22[%c0_12, %c48], %14 {strides = array<i32>} : memref<8x80xf32, #tpu.memory_space<vmem>>, vector<1x16xf32>,
    %16 = vector.extract_strided_slice %1 {offsets = [0, 0], sizes = [7, 16], strides = [1, 1]} : vector<8x16xf32> to vector<7x16xf32>
    %c1 = arith.constant 1 : index
    %c48_13 = arith.constant 48 : index
    %17 = vector.load %arg22[%c1, %c48_13] : memref<8x80xf32, #tpu.memory_space<vmem>>, vector<7x16xf32>
    tpu.vector_store %arg22[%c1, %c48_13], %16 {strides = array<i32>} : memref<8x80xf32, #tpu.memory_space<vmem>>, vector<7x16xf32>,
    %c0_14 = arith.constant 0 : index
    %c64 = arith.constant 64 : index
    %18 = vector.load %arg22[%c0_14, %c64] : memref<8x80xf32, #tpu.memory_space<vmem>>, vector<8x16xf32>
    tpu.vector_store %arg22[%c0_14, %c64], %1 {strides = array<i32>} : memref<8x80xf32, #tpu.memory_space<vmem>>, vector<8x16xf32>,
    %c0_15 = arith.constant 0 : index
    %c0_16 = arith.constant 0 : index
    %19 = vector.load %arg22[%c0_15, %c0_16] : memref<8x80xf32, #tpu.memory_space<vmem>>, vector<8x80xf32>
    %c0_17 = arith.constant 0 : index
    %c0_18 = arith.constant 0 : index
    %20 = vector.load %arg2[%c0_17, %c0_18] : memref<80x16xf32, #tpu.memory_space<vmem>>, vector<80x16xf32>
    %cst_19 = arith.constant dense<0.000000e+00> : vector<8x16xf32>
    %21 = tpu.matmul %19, %20, %cst_19 {dimension_numbers = #tpu.dot_dimension_numbers<[1], [0], [0], [1], [0, 0, 1, 1], [], []>} : vector<8x80xf32>, vector<80x16xf32>, vector<8x16xf32> -> vector<8x16xf32>
    %c0_20 = arith.constant 0 : index
    %c0_21 = arith.constant 0 : index
    %22 = vector.load %arg3[%c0_20, %c0_21] : memref<1x16xf32, #tpu.memory_space<vmem>>, vector<1x16xf32>
    %23 = vector.broadcast %22 : vector<1x16xf32> to vector<8x16xf32>
    %24 = arith.mulf %21, %23 : vector<8x16xf32>
    %c0_22 = arith.constant 0 : index
    %c0_23 = arith.constant 0 : index
    %25 = vector.load %arg4[%c0_22, %c0_23] : memref<1x16xf32, #tpu.memory_space<vmem>>, vector<1x16xf32>
    %26 = vector.broadcast %25 : vector<1x16xf32> to vector<8x16xf32>
    %27 = arith.addf %24, %26 : vector<8x16xf32>
    %cst_24 = arith.constant 0.000000e+00 : f32
    %28 = vector.broadcast %cst_24 : f32 to vector<8x16xf32>
    %29 = arith.maximumf %27, %28 : vector<8x16xf32>
    %cst_25 = arith.constant 0.000000e+00 : f32
    %30 = vector.broadcast %cst_25 : f32 to vector<4x16xf32>
    %c0_26 = arith.constant 0 : index
    %c0_27 = arith.constant 0 : index
    %31 = vector.load %arg22[%c0_26, %c0_27] : memref<8x80xf32, #tpu.memory_space<vmem>>, vector<4x16xf32>
    tpu.vector_store %arg22[%c0_26, %c0_27], %30 {strides = array<i32>} : memref<8x80xf32, #tpu.memory_space<vmem>>, vector<4x16xf32>,
    %32 = vector.extract_strided_slice %29 {offsets = [0, 0], sizes = [4, 16], strides = [1, 1]} : vector<8x16xf32> to vector<4x16xf32>
    %c4_28 = arith.constant 4 : index
    %c0_29 = arith.constant 0 : index
    %33 = vector.load %arg22[%c4_28, %c0_29] : memref<8x80xf32, #tpu.memory_space<vmem>>, vector<4x16xf32>
    tpu.vector_store %arg22[%c4_28, %c0_29], %32 {strides = array<i32>} : memref<8x80xf32, #tpu.memory_space<vmem>>, vector<4x16xf32>,
    %cst_30 = arith.constant 0.000000e+00 : f32
    %34 = vector.broadcast %cst_30 : f32 to vector<3x16xf32>
    %c0_31 = arith.constant 0 : index
    %c16_32 = arith.constant 16 : index
    %35 = vector.load %arg22[%c0_31, %c16_32] : memref<8x80xf32, #tpu.memory_space<vmem>>, vector<3x16xf32>
    tpu.vector_store %arg22[%c0_31, %c16_32], %34 {strides = array<i32>} : memref<8x80xf32, #tpu.memory_space<vmem>>, vector<3x16xf32>,
    %36 = vector.extract_strided_slice %29 {offsets = [0, 0], sizes = [5, 16], strides = [1, 1]} : vector<8x16xf32> to vector<5x16xf32>
    %c3_33 = arith.constant 3 : index
    %c16_34 = arith.constant 16 : index
    %37 = vector.load %arg22[%c3_33, %c16_34] : memref<8x80xf32, #tpu.memory_space<vmem>>, vector<5x16xf32>
    tpu.vector_store %arg22[%c3_33, %c16_34], %36 {strides = array<i32>} : memref<8x80xf32, #tpu.memory_space<vmem>>, vector<5x16xf32>,
    %cst_35 = arith.constant 0.000000e+00 : f32
    %38 = vector.broadcast %cst_35 : f32 to vector<2x16xf32>
    %c0_36 = arith.constant 0 : index
    %c32_37 = arith.constant 32 : index
    %39 = vector.load %arg22[%c0_36, %c32_37] : memref<8x80xf32, #tpu.memory_space<vmem>>, vector<2x16xf32>
    tpu.vector_store %arg22[%c0_36, %c32_37], %38 {strides = array<i32>} : memref<8x80xf32, #tpu.memory_space<vmem>>, vector<2x16xf32>,
    %40 = vector.extract_strided_slice %29 {offsets = [0, 0], sizes = [6, 16], strides = [1, 1]} : vector<8x16xf32> to vector<6x16xf32>
    %c2_38 = arith.constant 2 : index
    %c32_39 = arith.constant 32 : index
    %41 = vector.load %arg22[%c2_38, %c32_39] : memref<8x80xf32, #tpu.memory_space<vmem>>, vector<6x16xf32>
    tpu.vector_store %arg22[%c2_38, %c32_39], %40 {strides = array<i32>} : memref<8x80xf32, #tpu.memory_space<vmem>>, vector<6x16xf32>,
    %cst_40 = arith.constant 0.000000e+00 : f32
    %42 = vector.broadcast %cst_40 : f32 to vector<1x16xf32>
    %c0_41 = arith.constant 0 : index
    %c48_42 = arith.constant 48 : index
    %43 = vector.load %arg22[%c0_41, %c48_42] : memref<8x80xf32, #tpu.memory_space<vmem>>, vector<1x16xf32>
    tpu.vector_store %arg22[%c0_41, %c48_42], %42 {strides = array<i32>} : memref<8x80xf32, #tpu.memory_space<vmem>>, vector<1x16xf32>,
    %44 = vector.extract_strided_slice %29 {offsets = [0, 0], sizes = [7, 16], strides = [1, 1]} : vector<8x16xf32> to vector<7x16xf32>
    %c1_43 = arith.constant 1 : index
    %c48_44 = arith.constant 48 : index
    %45 = vector.load %arg22[%c1_43, %c48_44] : memref<8x80xf32, #tpu.memory_space<vmem>>, vector<7x16xf32>
    tpu.vector_store %arg22[%c1_43, %c48_44], %44 {strides = array<i32>} : memref<8x80xf32, #tpu.memory_space<vmem>>, vector<7x16xf32>,
    %c0_45 = arith.constant 0 : index
    %c64_46 = arith.constant 64 : index
    %46 = vector.load %arg22[%c0_45, %c64_46] : memref<8x80xf32, #tpu.memory_space<vmem>>, vector<8x16xf32>
    tpu.vector_store %arg22[%c0_45, %c64_46], %29 {strides = array<i32>} : memref<8x80xf32, #tpu.memory_space<vmem>>, vector<8x16xf32>,
    %c0_47 = arith.constant 0 : index
    %c0_48 = arith.constant 0 : index
    %47 = vector.load %arg22[%c0_47, %c0_48] : memref<8x80xf32, #tpu.memory_space<vmem>>, vector<8x80xf32>
    %c0_49 = arith.constant 0 : index
    %c0_50 = arith.constant 0 : index
    %48 = vector.load %arg5[%c0_49, %c0_50] : memref<80x16xf32, #tpu.memory_space<vmem>>, vector<80x16xf32>
    %cst_51 = arith.constant dense<0.000000e+00> : vector<8x16xf32>
    %49 = tpu.matmul %47, %48, %cst_51 {dimension_numbers = #tpu.dot_dimension_numbers<[1], [0], [0], [1], [0, 0, 1, 1], [], []>} : vector<8x80xf32>, vector<80x16xf32>, vector<8x16xf32> -> vector<8x16xf32>
    %c0_52 = arith.constant 0 : index
    %c0_53 = arith.constant 0 : index
    %50 = vector.load %arg6[%c0_52, %c0_53] : memref<1x16xf32, #tpu.memory_space<vmem>>, vector<1x16xf32>
    %51 = vector.broadcast %50 : vector<1x16xf32> to vector<8x16xf32>
    %52 = arith.mulf %49, %51 : vector<8x16xf32>
    %c0_54 = arith.constant 0 : index
    %c0_55 = arith.constant 0 : index
    %53 = vector.load %arg7[%c0_54, %c0_55] : memref<1x16xf32, #tpu.memory_space<vmem>>, vector<1x16xf32>
    %54 = vector.broadcast %53 : vector<1x16xf32> to vector<8x16xf32>
    %55 = arith.addf %52, %54 : vector<8x16xf32>
    %cst_56 = arith.constant 0.000000e+00 : f32
    %56 = vector.broadcast %cst_56 : f32 to vector<8x16xf32>
    %57 = arith.maximumf %55, %56 : vector<8x16xf32>
    %c0_57 = arith.constant 0 : index
    %c0_58 = arith.constant 0 : index
    %58 = vector.load %arg8[%c0_57, %c0_58] : memref<16x16xf32, #tpu.memory_space<vmem>>, vector<16x16xf32>
    %cst_59 = arith.constant dense<0.000000e+00> : vector<8x16xf32>
    %59 = tpu.matmul %1, %58, %cst_59 {dimension_numbers = #tpu.dot_dimension_numbers<[1], [0], [0], [1], [0, 0, 1, 1], [], []>} : vector<8x16xf32>, vector<16x16xf32>, vector<8x16xf32> -> vector<8x16xf32>
    %c0_60 = arith.constant 0 : index
    %c0_61 = arith.constant 0 : index
    %60 = vector.load %arg9[%c0_60, %c0_61] : memref<1x16xf32, #tpu.memory_space<vmem>>, vector<1x16xf32>
    %61 = vector.broadcast %60 : vector<1x16xf32> to vector<8x16xf32>
    %62 = arith.addf %59, %61 : vector<8x16xf32>
    %63 = arith.addf %57, %62 : vector<8x16xf32>
    %cst_62 = arith.constant 0.000000e+00 : f32
    %64 = vector.broadcast %cst_62 : f32 to vector<8x16xf32>
    %65 = arith.maximumf %63, %64 : vector<8x16xf32>
    %cst_63 = arith.constant 0.000000e+00 : f32
    %66 = vector.broadcast %cst_63 : f32 to vector<8x16xf32>
    %c0_64 = arith.constant 0 : index
    %c0_65 = arith.constant 0 : index
    %67 = vector.load %arg22[%c0_64, %c0_65] : memref<8x80xf32, #tpu.memory_space<vmem>>, vector<8x16xf32>
    tpu.vector_store %arg22[%c0_64, %c0_65], %66 {strides = array<i32>} : memref<8x80xf32, #tpu.memory_space<vmem>>, vector<8x16xf32>,
    %cst_66 = arith.constant 0.000000e+00 : f32
    %68 = vector.broadcast %cst_66 : f32 to vector<6x16xf32>
    %c0_67 = arith.constant 0 : index
    %c16_68 = arith.constant 16 : index
    %69 = vector.load %arg22[%c0_67, %c16_68] : memref<8x80xf32, #tpu.memory_space<vmem>>, vector<6x16xf32>
    tpu.vector_store %arg22[%c0_67, %c16_68], %68 {strides = array<i32>} : memref<8x80xf32, #tpu.memory_space<vmem>>, vector<6x16xf32>,
    %70 = vector.extract_strided_slice %65 {offsets = [0, 0], sizes = [2, 16], strides = [1, 1]} : vector<8x16xf32> to vector<2x16xf32>
    %c6 = arith.constant 6 : index
    %c16_69 = arith.constant 16 : index
    %71 = vector.load %arg22[%c6, %c16_69] : memref<8x80xf32, #tpu.memory_space<vmem>>, vector<2x16xf32>
    tpu.vector_store %arg22[%c6, %c16_69], %70 {strides = array<i32>} : memref<8x80xf32, #tpu.memory_space<vmem>>, vector<2x16xf32>,
    %cst_70 = arith.constant 0.000000e+00 : f32
    %72 = vector.broadcast %cst_70 : f32 to vector<4x16xf32>
    %c0_71 = arith.constant 0 : index
    %c32_72 = arith.constant 32 : index
    %73 = vector.load %arg22[%c0_71, %c32_72] : memref<8x80xf32, #tpu.memory_space<vmem>>, vector<4x16xf32>
    tpu.vector_store %arg22[%c0_71, %c32_72], %72 {strides = array<i32>} : memref<8x80xf32, #tpu.memory_space<vmem>>, vector<4x16xf32>,
    %74 = vector.extract_strided_slice %65 {offsets = [0, 0], sizes = [4, 16], strides = [1, 1]} : vector<8x16xf32> to vector<4x16xf32>
    %c4_73 = arith.constant 4 : index
    %c32_74 = arith.constant 32 : index
    %75 = vector.load %arg22[%c4_73, %c32_74] : memref<8x80xf32, #tpu.memory_space<vmem>>, vector<4x16xf32>
    tpu.vector_store %arg22[%c4_73, %c32_74], %74 {strides = array<i32>} : memref<8x80xf32, #tpu.memory_space<vmem>>, vector<4x16xf32>,
    %cst_75 = arith.constant 0.000000e+00 : f32
    %76 = vector.broadcast %cst_75 : f32 to vector<2x16xf32>
    %c0_76 = arith.constant 0 : index
    %c48_77 = arith.constant 48 : index
    %77 = vector.load %arg22[%c0_76, %c48_77] : memref<8x80xf32, #tpu.memory_space<vmem>>, vector<2x16xf32>
    tpu.vector_store %arg22[%c0_76, %c48_77], %76 {strides = array<i32>} : memref<8x80xf32, #tpu.memory_space<vmem>>, vector<2x16xf32>,
    %78 = vector.extract_strided_slice %65 {offsets = [0, 0], sizes = [6, 16], strides = [1, 1]} : vector<8x16xf32> to vector<6x16xf32>
    %c2_78 = arith.constant 2 : index
    %c48_79 = arith.constant 48 : index
    %79 = vector.load %arg22[%c2_78, %c48_79] : memref<8x80xf32, #tpu.memory_space<vmem>>, vector<6x16xf32>
    tpu.vector_store %arg22[%c2_78, %c48_79], %78 {strides = array<i32>} : memref<8x80xf32, #tpu.memory_space<vmem>>, vector<6x16xf32>,
    %c0_80 = arith.constant 0 : index
    %c64_81 = arith.constant 64 : index
    %80 = vector.load %arg22[%c0_80, %c64_81] : memref<8x80xf32, #tpu.memory_space<vmem>>, vector<8x16xf32>
    tpu.vector_store %arg22[%c0_80, %c64_81], %65 {strides = array<i32>} : memref<8x80xf32, #tpu.memory_space<vmem>>, vector<8x16xf32>,
    %c0_82 = arith.constant 0 : index
    %c0_83 = arith.constant 0 : index
    %81 = vector.load %arg22[%c0_82, %c0_83] : memref<8x80xf32, #tpu.memory_space<vmem>>, vector<8x80xf32>
    %c0_84 = arith.constant 0 : index
    %c0_85 = arith.constant 0 : index
    %82 = vector.load %arg10[%c0_84, %c0_85] : memref<80x16xf32, #tpu.memory_space<vmem>>, vector<80x16xf32>
    %cst_86 = arith.constant dense<0.000000e+00> : vector<8x16xf32>
    %83 = tpu.matmul %81, %82, %cst_86 {dimension_numbers = #tpu.dot_dimension_numbers<[1], [0], [0], [1], [0, 0, 1, 1], [], []>} : vector<8x80xf32>, vector<80x16xf32>, vector<8x16xf32> -> vector<8x16xf32>
    %c0_87 = arith.constant 0 : index
    %c0_88 = arith.constant 0 : index
    %84 = vector.load %arg11[%c0_87, %c0_88] : memref<1x16xf32, #tpu.memory_space<vmem>>, vector<1x16xf32>
    %85 = vector.broadcast %84 : vector<1x16xf32> to vector<8x16xf32>
    %86 = arith.mulf %83, %85 : vector<8x16xf32>
    %c0_89 = arith.constant 0 : index
    %c0_90 = arith.constant 0 : index
    %87 = vector.load %arg12[%c0_89, %c0_90] : memref<1x16xf32, #tpu.memory_space<vmem>>, vector<1x16xf32>
    %88 = vector.broadcast %87 : vector<1x16xf32> to vector<8x16xf32>
    %89 = arith.addf %86, %88 : vector<8x16xf32>
    %cst_91 = arith.constant 0.000000e+00 : f32
    %90 = vector.broadcast %cst_91 : f32 to vector<8x16xf32>
    %91 = arith.maximumf %89, %90 : vector<8x16xf32>
    %cst_92 = arith.constant 0.000000e+00 : f32
    %92 = vector.broadcast %cst_92 : f32 to vector<8x16xf32>
    %c0_93 = arith.constant 0 : index
    %c0_94 = arith.constant 0 : index
    %93 = vector.load %arg22[%c0_93, %c0_94] : memref<8x80xf32, #tpu.memory_space<vmem>>, vector<8x16xf32>
    tpu.vector_store %arg22[%c0_93, %c0_94], %92 {strides = array<i32>} : memref<8x80xf32, #tpu.memory_space<vmem>>, vector<8x16xf32>,
    %cst_95 = arith.constant 0.000000e+00 : f32
    %94 = vector.broadcast %cst_95 : f32 to vector<6x16xf32>
    %c0_96 = arith.constant 0 : index
    %c16_97 = arith.constant 16 : index
    %95 = vector.load %arg22[%c0_96, %c16_97] : memref<8x80xf32, #tpu.memory_space<vmem>>, vector<6x16xf32>
    tpu.vector_store %arg22[%c0_96, %c16_97], %94 {strides = array<i32>} : memref<8x80xf32, #tpu.memory_space<vmem>>, vector<6x16xf32>,
    %96 = vector.extract_strided_slice %91 {offsets = [0, 0], sizes = [2, 16], strides = [1, 1]} : vector<8x16xf32> to vector<2x16xf32>
    %c6_98 = arith.constant 6 : index
    %c16_99 = arith.constant 16 : index
    %97 = vector.load %arg22[%c6_98, %c16_99] : memref<8x80xf32, #tpu.memory_space<vmem>>, vector<2x16xf32>
    tpu.vector_store %arg22[%c6_98, %c16_99], %96 {strides = array<i32>} : memref<8x80xf32, #tpu.memory_space<vmem>>, vector<2x16xf32>,
    %cst_100 = arith.constant 0.000000e+00 : f32
    %98 = vector.broadcast %cst_100 : f32 to vector<4x16xf32>
    %c0_101 = arith.constant 0 : index
    %c32_102 = arith.constant 32 : index
    %99 = vector.load %arg22[%c0_101, %c32_102] : memref<8x80xf32, #tpu.memory_space<vmem>>, vector<4x16xf32>
    tpu.vector_store %arg22[%c0_101, %c32_102], %98 {strides = array<i32>} : memref<8x80xf32, #tpu.memory_space<vmem>>, vector<4x16xf32>,
    %100 = vector.extract_strided_slice %91 {offsets = [0, 0], sizes = [4, 16], strides = [1, 1]} : vector<8x16xf32> to vector<4x16xf32>
    %c4_103 = arith.constant 4 : index
    %c32_104 = arith.constant 32 : index
    %101 = vector.load %arg22[%c4_103, %c32_104] : memref<8x80xf32, #tpu.memory_space<vmem>>, vector<4x16xf32>
    tpu.vector_store %arg22[%c4_103, %c32_104], %100 {strides = array<i32>} : memref<8x80xf32, #tpu.memory_space<vmem>>, vector<4x16xf32>,
    %cst_105 = arith.constant 0.000000e+00 : f32
    %102 = vector.broadcast %cst_105 : f32 to vector<2x16xf32>
    %c0_106 = arith.constant 0 : index
    %c48_107 = arith.constant 48 : index
    %103 = vector.load %arg22[%c0_106, %c48_107] : memref<8x80xf32, #tpu.memory_space<vmem>>, vector<2x16xf32>
    tpu.vector_store %arg22[%c0_106, %c48_107], %102 {strides = array<i32>} : memref<8x80xf32, #tpu.memory_space<vmem>>, vector<2x16xf32>,
    %104 = vector.extract_strided_slice %91 {offsets = [0, 0], sizes = [6, 16], strides = [1, 1]} : vector<8x16xf32> to vector<6x16xf32>
    %c2_108 = arith.constant 2 : index
    %c48_109 = arith.constant 48 : index
    %105 = vector.load %arg22[%c2_108, %c48_109] : memref<8x80xf32, #tpu.memory_space<vmem>>, vector<6x16xf32>
    tpu.vector_store %arg22[%c2_108, %c48_109], %104 {strides = array<i32>} : memref<8x80xf32, #tpu.memory_space<vmem>>, vector<6x16xf32>,
    %c0_110 = arith.constant 0 : index
    %c64_111 = arith.constant 64 : index
    %106 = vector.load %arg22[%c0_110, %c64_111] : memref<8x80xf32, #tpu.memory_space<vmem>>, vector<8x16xf32>
    tpu.vector_store %arg22[%c0_110, %c64_111], %91 {strides = array<i32>} : memref<8x80xf32, #tpu.memory_space<vmem>>, vector<8x16xf32>,
    %c0_112 = arith.constant 0 : index
    %c0_113 = arith.constant 0 : index
    %107 = vector.load %arg22[%c0_112, %c0_113] : memref<8x80xf32, #tpu.memory_space<vmem>>, vector<8x80xf32>
    %c0_114 = arith.constant 0 : index
    %c0_115 = arith.constant 0 : index
    %108 = vector.load %arg13[%c0_114, %c0_115] : memref<80x16xf32, #tpu.memory_space<vmem>>, vector<80x16xf32>
    %cst_116 = arith.constant dense<0.000000e+00> : vector<8x16xf32>
    %109 = tpu.matmul %107, %108, %cst_116 {dimension_numbers = #tpu.dot_dimension_numbers<[1], [0], [0], [1], [0, 0, 1, 1], [], []>} : vector<8x80xf32>, vector<80x16xf32>, vector<8x16xf32> -> vector<8x16xf32>
    %c0_117 = arith.constant 0 : index
    %c0_118 = arith.constant 0 : index
    %110 = vector.load %arg14[%c0_117, %c0_118] : memref<1x16xf32, #tpu.memory_space<vmem>>, vector<1x16xf32>
    %111 = vector.broadcast %110 : vector<1x16xf32> to vector<8x16xf32>
    %112 = arith.mulf %109, %111 : vector<8x16xf32>
    %c0_119 = arith.constant 0 : index
    %c0_120 = arith.constant 0 : index
    %113 = vector.load %arg15[%c0_119, %c0_120] : memref<1x16xf32, #tpu.memory_space<vmem>>, vector<1x16xf32>
    %114 = vector.broadcast %113 : vector<1x16xf32> to vector<8x16xf32>
    %115 = arith.addf %112, %114 : vector<8x16xf32>
    %cst_121 = arith.constant 0.000000e+00 : f32
    %116 = vector.broadcast %cst_121 : f32 to vector<8x16xf32>
    %117 = arith.maximumf %115, %116 : vector<8x16xf32>
    %c0_122 = arith.constant 0 : index
    %c0_123 = arith.constant 0 : index
    %118 = vector.load %arg16[%c0_122, %c0_123] : memref<16x16xf32, #tpu.memory_space<vmem>>, vector<16x16xf32>
    %cst_124 = arith.constant dense<0.000000e+00> : vector<8x16xf32>
    %119 = tpu.matmul %65, %118, %cst_124 {dimension_numbers = #tpu.dot_dimension_numbers<[1], [0], [0], [1], [0, 0, 1, 1], [], []>} : vector<8x16xf32>, vector<16x16xf32>, vector<8x16xf32> -> vector<8x16xf32>
    %c0_125 = arith.constant 0 : index
    %c0_126 = arith.constant 0 : index
    %120 = vector.load %arg17[%c0_125, %c0_126] : memref<1x16xf32, #tpu.memory_space<vmem>>, vector<1x16xf32>
    %121 = vector.broadcast %120 : vector<1x16xf32> to vector<8x16xf32>
    %122 = arith.addf %119, %121 : vector<8x16xf32>
    %123 = arith.addf %117, %122 : vector<8x16xf32>
    %cst_127 = arith.constant 0.000000e+00 : f32
    %124 = vector.broadcast %cst_127 : f32 to vector<8x16xf32>
    %125 = arith.maximumf %123, %124 : vector<8x16xf32>
    %c0_128 = arith.constant 0 : index
    %c0_129 = arith.constant 0 : index
    %126 = vector.load %arg18[%c0_128, %c0_129] : memref<16x28xf32, #tpu.memory_space<vmem>>, vector<16x28xf32>
    %cst_130 = arith.constant dense<0.000000e+00> : vector<8x28xf32>
    %127 = tpu.matmul %125, %126, %cst_130 {dimension_numbers = #tpu.dot_dimension_numbers<[1], [0], [0], [1], [0, 0, 1, 1], [], []>} : vector<8x16xf32>, vector<16x28xf32>, vector<8x28xf32> -> vector<8x28xf32>
    %c0_131 = arith.constant 0 : index
    %c0_132 = arith.constant 0 : index
    %128 = vector.load %arg19[%c0_131, %c0_132] : memref<1x28xf32, #tpu.memory_space<vmem>>, vector<1x28xf32>
    %129 = vector.broadcast %128 : vector<1x28xf32> to vector<8x28xf32>
    %130 = arith.addf %127, %129 : vector<8x28xf32>
    %131 = vector.extract_strided_slice %130 {offsets = [0, 0], sizes = [8, 16], strides = [1, 1]} : vector<8x28xf32> to vector<8x16xf32>
    %c0_133 = arith.constant 0 : index
    %c0_134 = arith.constant 0 : index
    %c0_135 = arith.constant 0 : index
    %132 = vector.load %arg20[%c0_133, %c0_134, %c0_135] : memref<1x8x16xf32, #tpu.memory_space<vmem>>, vector<1x8x16xf32>
    %133 = vector.shape_cast %132 : vector<1x8x16xf32> to vector<8x16xf32>
    %134 = vector.shape_cast %131 : vector<8x16xf32> to vector<1x8x16xf32>
    tpu.vector_store %arg20[%c0_133, %c0_134, %c0_135], %134 {strides = array<i32>} : memref<1x8x16xf32, #tpu.memory_space<vmem>>, vector<1x8x16xf32>,
    %135 = vector.extract_strided_slice %130 {offsets = [0, 16], sizes = [8, 12], strides = [1, 1]} : vector<8x28xf32> to vector<8x12xf32>
    %c0_136 = arith.constant 0 : index
    %c0_137 = arith.constant 0 : index
    %c0_138 = arith.constant 0 : index
    %136 = vector.load %arg21[%c0_136, %c0_137, %c0_138] : memref<1x8x12xf32, #tpu.memory_space<vmem>>, vector<1x8x12xf32>
    %137 = vector.shape_cast %136 : vector<1x8x12xf32> to vector<8x12xf32>
    %138 = vector.shape_cast %135 : vector<8x12xf32> to vector<1x8x12xf32>
    tpu.vector_store %arg21[%c0_136, %c0_137, %c0_138], %138 {strides = array<i32>} : memref<1x8x12xf32, #tpu.memory_space<vmem>>, vector<1x8x12xf32>,
    return
  }
  func.func @transform_0(%arg0: i32) -> (i32, i32, i32) {
    %c0_i32 = arith.constant 0 : i32
    %c0_i32_0 = arith.constant 0 : i32
    %c0_i32_1 = arith.constant 0 : i32
    return %arg0, %c0_i32, %c0_i32_0 : i32, i32, i32
  }
  func.func @transform_1(%arg0: i32) -> (i32, i32) {
    %c0_i32 = arith.constant 0 : i32
    %c0_i32_0 = arith.constant 0 : i32
    %c0_i32_1 = arith.constant 0 : i32
    return %c0_i32, %c0_i32_0 : i32, i32
  }
  func.func @transform_2(%arg0: i32) -> (i32, i32) {
    %c0_i32 = arith.constant 0 : i32
    %c0_i32_0 = arith.constant 0 : i32
    %c0_i32_1 = arith.constant 0 : i32
    return %c0_i32, %c0_i32_0 : i32, i32
  }
  func.func @transform_3(%arg0: i32) -> (i32, i32) {
    %c0_i32 = arith.constant 0 : i32
    %c0_i32_0 = arith.constant 0 : i32
    %c0_i32_1 = arith.constant 0 : i32
    return %c0_i32, %c0_i32_0 : i32, i32
  }
  func.func @transform_4(%arg0: i32) -> (i32, i32) {
    %c0_i32 = arith.constant 0 : i32
    %c0_i32_0 = arith.constant 0 : i32
    %c0_i32_1 = arith.constant 0 : i32
    return %c0_i32, %c0_i32_0 : i32, i32
  }
  func.func @transform_5(%arg0: i32) -> (i32, i32) {
    %c0_i32 = arith.constant 0 : i32
    %c0_i32_0 = arith.constant 0 : i32
    %c0_i32_1 = arith.constant 0 : i32
    return %c0_i32, %c0_i32_0 : i32, i32
  }
  func.func @transform_6(%arg0: i32) -> (i32, i32) {
    %c0_i32 = arith.constant 0 : i32
    %c0_i32_0 = arith.constant 0 : i32
    %c0_i32_1 = arith.constant 0 : i32
    return %c0_i32, %c0_i32_0 : i32, i32
  }
  func.func @transform_7(%arg0: i32) -> (i32, i32) {
    %c0_i32 = arith.constant 0 : i32
    %c0_i32_0 = arith.constant 0 : i32
    %c0_i32_1 = arith.constant 0 : i32
    return %c0_i32, %c0_i32_0 : i32, i32
  }
  func.func @transform_8(%arg0: i32) -> (i32, i32) {
    %c0_i32 = arith.constant 0 : i32
    %c0_i32_0 = arith.constant 0 : i32
    %c0_i32_1 = arith.constant 0 : i32
    return %c0_i32, %c0_i32_0 : i32, i32
  }
  func.func @transform_9(%arg0: i32) -> (i32, i32) {
    %c0_i32 = arith.constant 0 : i32
    %c0_i32_0 = arith.constant 0 : i32
    %c0_i32_1 = arith.constant 0 : i32
    return %c0_i32, %c0_i32_0 : i32, i32
  }
  func.func @transform_10(%arg0: i32) -> (i32, i32) {
    %c0_i32 = arith.constant 0 : i32
    %c0_i32_0 = arith.constant 0 : i32
    %c0_i32_1 = arith.constant 0 : i32
    return %c0_i32, %c0_i32_0 : i32, i32
  }
  func.func @transform_11(%arg0: i32) -> (i32, i32) {
    %c0_i32 = arith.constant 0 : i32
    %c0_i32_0 = arith.constant 0 : i32
    %c0_i32_1 = arith.constant 0 : i32
    return %c0_i32, %c0_i32_0 : i32, i32
  }
  func.func @transform_12(%arg0: i32) -> (i32, i32) {
    %c0_i32 = arith.constant 0 : i32
    %c0_i32_0 = arith.constant 0 : i32
    %c0_i32_1 = arith.constant 0 : i32
    return %c0_i32, %c0_i32_0 : i32, i32
  }
  func.func @transform_13(%arg0: i32) -> (i32, i32) {
    %c0_i32 = arith.constant 0 : i32
    %c0_i32_0 = arith.constant 0 : i32
    %c0_i32_1 = arith.constant 0 : i32
    return %c0_i32, %c0_i32_0 : i32, i32
  }
  func.func @transform_14(%arg0: i32) -> (i32, i32) {
    %c0_i32 = arith.constant 0 : i32
    %c0_i32_0 = arith.constant 0 : i32
    %c0_i32_1 = arith.constant 0 : i32
    return %c0_i32, %c0_i32_0 : i32, i32
  }
  func.func @transform_15(%arg0: i32) -> (i32, i32) {
    %c0_i32 = arith.constant 0 : i32
    %c0_i32_0 = arith.constant 0 : i32
    %c0_i32_1 = arith.constant 0 : i32
    return %c0_i32, %c0_i32_0 : i32, i32
  }
  func.func @transform_16(%arg0: i32) -> (i32, i32) {
    %c0_i32 = arith.constant 0 : i32
    %c0_i32_0 = arith.constant 0 : i32
    %c0_i32_1 = arith.constant 0 : i32
    return %c0_i32, %c0_i32_0 : i32, i32
  }
  func.func @transform_17(%arg0: i32) -> (i32, i32) {
    %c0_i32 = arith.constant 0 : i32
    %c0_i32_0 = arith.constant 0 : i32
    %c0_i32_1 = arith.constant 0 : i32
    return %c0_i32, %c0_i32_0 : i32, i32
  }
  func.func @transform_18(%arg0: i32) -> (i32, i32) {
    %c0_i32 = arith.constant 0 : i32
    %c0_i32_0 = arith.constant 0 : i32
    %c0_i32_1 = arith.constant 0 : i32
    return %c0_i32, %c0_i32_0 : i32, i32
  }
  func.func @transform_19(%arg0: i32) -> (i32, i32, i32) {
    %c0_i32 = arith.constant 0 : i32
    %c0_i32_0 = arith.constant 0 : i32
    %c0_i32_1 = arith.constant 0 : i32
    return %arg0, %c0_i32, %c0_i32_0 : i32, i32, i32
  }
  func.func @transform_20(%arg0: i32) -> (i32, i32, i32) {
    %c0_i32 = arith.constant 0 : i32
    %c0_i32_0 = arith.constant 0 : i32
    %c0_i32_1 = arith.constant 0 : i32
    return %arg0, %c0_i32, %c0_i32_0 : i32, i32, i32
  }
}

</mosaic_0001>

<llo_original>
// kernel: _lambda_.1
$region0: #{_lambda_.1}
  #allocation0 [shape = 'u32[]', space=smem, size = 0x4, offset = 0x4, fixed_abs, tag = 'smem constant byte address 0x4 - core index']
  #allocation1 [shape = 'u32[72,128]{1,0:T(1,128)}', space=vmem, size = 0x9000, scoped, tag = 'internal scratch']
  #allocation2 [shape = 'f32[8,80]{1,0:T(8,128)}', space=vmem, size = 0x1000, scoped, tag = 'scratch operand']
  %s0 = inlined_call_operand.hbm [shape: f32[2,8,16], index: 0, kind: input, shape index: {}]
  %s1 = inlined_call_operand.hbm [shape: f32[80,16], index: 1, kind: input, shape index: {}]
  %s2 = inlined_call_operand.vmem [shape: f32[1,16], index: 2, kind: input, shape index: {}, may-alias: {2,5,10,13}]
  %s3 = inlined_call_operand.hbm [shape: f32[1,16], index: 3, kind: input, shape index: {}]
  %s4 = inlined_call_operand.hbm [shape: f32[80,16], index: 4, kind: input, shape index: {}]
  %s5 = inlined_call_operand.vmem [shape: f32[1,16], index: 5, kind: input, shape index: {}, may-alias: {2,5,10,13}]
  %s6 = inlined_call_operand.vmem [shape: f32[1,16], index: 6, kind: input, shape index: {}]
  %s7 = inlined_call_operand.hbm [shape: f32[16,16], index: 7, kind: input, shape index: {}]
  %s8 = inlined_call_operand.vmem [shape: f32[1,16], index: 8, kind: input, shape index: {}]
  %s9 = inlined_call_operand.hbm [shape: f32[80,16], index: 9, kind: input, shape index: {}]
  %s10 = inlined_call_operand.vmem [shape: f32[1,16], index: 10, kind: input, shape index: {}, may-alias: {2,5,10,13}]
  %s11 = inlined_call_operand.vmem [shape: f32[1,16], index: 11, kind: input, shape index: {}]
  %s12 = inlined_call_operand.hbm [shape: f32[80,16], index: 12, kind: input, shape index: {}]
  %s13 = inlined_call_operand.vmem [shape: f32[1,16], index: 13, kind: input, shape index: {}, may-alias: {2,5,10,13}]
  %s14 = inlined_call_operand.vmem [shape: f32[1,16], index: 14, kind: input, shape index: {}]
  %s15 = inlined_call_operand.hbm [shape: f32[16,16], index: 15, kind: input, shape index: {}]
  %s16 = inlined_call_operand.vmem [shape: f32[1,16], index: 16, kind: input, shape index: {}]
  %s17 = inlined_call_operand.hbm [shape: f32[16,28], index: 17, kind: input, shape index: {}]
  %s18 = inlined_call_operand.vmem [shape: f32[1,28], index: 18, kind: input, shape index: {}]
  %s19 = inlined_call_operand.hbm [shape: f32[2,8,16], index: 19, kind: output, shape index: {0}]
  %s20 = inlined_call_operand.hbm [shape: f32[2,8,12], index: 20, kind: output, shape index: {1}]
  %21 = xla_tuple %s19, %s20
  %s22 = sld [smem:[#allocation0]]
  $region153: #{_lambda_.1} parent=0
    _
  %s24 = ssub.s32 1, %s22
  %s25 = scalar_select 0, %s24, %s22
  $region1: #{_lambda_.1} parent=0
    #allocation3 [shape = 'u8[8192]{0}', space=vmem, size = 0x2000, scoped, tag = 'input window, operand 0']
    #allocation4 [shape = 's32[2]{0}', space=sflag, size = 0x8, scoped, tag = 'scoped memory for _lambda_.1']
    #allocation5 [shape = 's32[2]{0}', space=sflag, size = 0x8, scoped, tag = 'scoped memory for _lambda_.1']
    #allocation6 [shape = 'u8[40960]{0}', space=vmem, size = 0xa000, scoped, tag = 'input window, operand 1, single buffered']
    #allocation7 [shape = 's32[1]{0}', space=sflag, size = 0x4, scoped, tag = 'scoped memory for _lambda_.1']
    #allocation8 [shape = 'u8[512]{0}', space=vmem, size = 0x400, scoped, tag = 'input window, operand 3, single buffered']
    #allocation9 [shape = 'u8[40960]{0}', space=vmem, size = 0xa000, scoped, tag = 'input window, operand 4, single buffered']
    #allocation10 [shape = 's32[1]{0}', space=sflag, size = 0x4, scoped, tag = 'scoped memory for _lambda_.1']
    #allocation11 [shape = 'u8[8192]{0}', space=vmem, size = 0x2000, scoped, tag = 'input window, operand 7, single buffered']
    #allocation12 [shape = 'u8[40960]{0}', space=vmem, size = 0xa000, scoped, tag = 'input window, operand 9, single buffered']
    #allocation13 [shape = 's32[1]{0}', space=sflag, size = 0x4, scoped, tag = 'scoped memory for _lambda_.1']
    #allocation14 [shape = 'u8[40960]{0}', space=vmem, size = 0xa000, scoped, tag = 'input window, operand 12, single buffered']
    #allocation15 [shape = 'u8[8192]{0}', space=vmem, size = 0x2000, scoped, tag = 'input window, operand 15, single buffered']
    #allocation16 [shape = 's32[1]{0}', space=sflag, size = 0x4, scoped, tag = 'scoped memory for _lambda_.1']
    #allocation17 [shape = 'u8[8192]{0}', space=vmem, size = 0x2000, scoped, tag = 'input window, operand 17, single buffered']
    #allocation18 [shape = 'u8[8192]{0}', space=vmem, size = 0x2000, scoped, tag = 'output window, operand 0']
    #allocation19 [shape = 'u8[8192]{0}', space=vmem, size = 0x2000, scoped, tag = 'output window, operand 1']
    #allocation20 [shape = 's32[2]{0}', space=sflag, size = 0x8, scoped, tag = 'scoped memory for _lambda_.1']
    %26 = vsyncpa [#allocation4], 0
    %s27 = scalar_lea.sflag [#allocation4], 1
    %28 = vsyncpa %s27, 0
    %29 = vsyncpa [#allocation7], 0
    %30 = vsyncpa [#allocation10], 0
    %31 = vsyncpa [#allocation13], 0
    %32 = vsyncpa [#allocation16], 0
    %33 = vsyncpa [#allocation5], 0
    %s34 = scalar_lea.sflag [#allocation5], 1
    %35 = vsyncpa %s34, 0
    %36 = vsyncpa [#allocation20], 0
    %s37 = scalar_lea.sflag [#allocation20], 1
    %38 = vsyncpa %s37, 0
    loop: start=0, step=1, limit=4
    $region2: #{_lambda_.1} parent=1 // loop_pre_header
      _
    $region3: #{_lambda_.1} parent=1 // loop_header
      %s40 = sphi 0, %s44
      %p41 = scmp.ge.s32.totalorder %s40, 4
      %s50 = sphi 0, %s52
      %s53 = sphi 0, %s50
      %s54 = sphi 0, %s53
      %s70 = sphi 0, %s54
      %s74 = sphi 0, %s74
      %s76 = sphi 0, %s74
      %s77 = sphi 0, %s76
      %s91 = sphi 0, %s77
      %s95 = sphi 0, %s95
      %s97 = sphi 0, %s95
      %s98 = sphi 0, %s97
      %s112 = sphi 0, %s98
      %s116 = sphi 0, %s116
      %s118 = sphi 0, %s116
      %s119 = sphi 0, %s118
      %s133 = sphi 0, %s119
      %s137 = sphi 0, %s137
      %s139 = sphi 0, %s137
      %s140 = sphi 0, %s139
      %s154 = sphi 0, %s140
      %s158 = sphi 0, %s158
      %s160 = sphi 0, %s158
      %s161 = sphi 0, %s160
      %s175 = sphi 0, %s161
      %s179 = sphi 0, %s179
      %s181 = sphi 0, %s179
      %s182 = sphi 0, %s181
      %s196 = sphi 0, %s182
      %s200 = sphi 0, %s200
      %s202 = sphi 0, %s200
      %s203 = sphi 0, %s202
      %s217 = sphi 0, %s203
      %s221 = sphi 0, %s221
      %s223 = sphi 0, %s221
      %s224 = sphi 0, %s223
      %s238 = sphi 0, %s224
      %s242 = sphi 0, %s242
      %s244 = sphi 0, %s242
      %s245 = sphi 0, %s244
      %s259 = sphi 0, %s245
      %s263 = sphi 0, %s263
      %s265 = sphi 0, %s263
      %s266 = sphi 0, %s265
      %s280 = sphi 0, %s266
      %s284 = sphi 0, %s284
      %s286 = sphi 0, %s284
      %s287 = sphi 0, %s286
      %s301 = sphi 0, %s287
      %s305 = sphi 0, %s305
      %s307 = sphi 0, %s305
      %s308 = sphi 0, %s307
      %s322 = sphi 0, %s308
      %s326 = sphi 0, %s326
      %s328 = sphi 0, %s326
      %s329 = sphi 0, %s328
      %s343 = sphi 0, %s329
      %s347 = sphi 0, %s347
      %s349 = sphi 0, %s347
      %s350 = sphi 0, %s349
      %s364 = sphi 0, %s350
      %s368 = sphi 0, %s368
      %s370 = sphi 0, %s368
      %s371 = sphi 0, %s370
      %s385 = sphi 0, %s371
      %s389 = sphi 0, %s389
      %s391 = sphi 0, %s389
      %s392 = sphi 0, %s391
      %s406 = sphi 0, %s392
      %s410 = sphi 0, %s410
      %s412 = sphi 0, %s410
      %s413 = sphi 0, %s412
      %s427 = sphi 0, %s413
      %s431 = sphi 0, %s431
      %s433 = sphi 0, %s431
      %s434 = sphi 0, %s433
      %s448 = sphi 0, %s434
      %s454 = sphi 0, %s456
      %s457 = sphi 0, %s454
      %s458 = sphi 0, %s457
      %s474 = sphi 0, %s458
      %s480 = sphi 0, %s482
      %s483 = sphi 0, %s480
      %s484 = sphi 0, %s483
      %s500 = sphi 0, %s484
    $region4: #{_lambda_.1} parent=1 // loop_header_branch
      %43 = sbr.rel (%p41) target = $region8
    $region5: #{_lambda_.1} parent=1 // loop_body
      %s45 = ssub.s32 %s40, 1
      %s46 = ssub.s32 %s40, 2
      %s47 = sadd.s32 %s40, 1
      %s48 = ssub.s32 %s40, %s47
      %p49 = scmp.eq.s32.totalorder %s48, 0
      %s51 = sadd.s32 %s50, 1
      %s52 = scalar_select %p49, %s50, %s51
      %p55 = pneg %p49
      %p56 = scmp.eq.s32.totalorder %s40, 1
      %p57 = por %p55, %p56
      %p58 = scmp.ne.s32.totalorder %s50, %s53
      %p59 = scmp.eq.s32.totalorder %s40, 0
      %p60 = por %p58, %p59
      %p61 = scmp.ne.s32.totalorder %s50, %s53
      %p62 = scmp.eq.s32.totalorder %s45, 1
      %p63 = por %p61, %p62
      %p64 = scmp.ne.s32.totalorder %s53, %s54
      %p65 = scmp.eq.s32.totalorder %s45, 0
      %p66 = por %p64, %p65
      %p67 = scmp.ne.s32.totalorder %s53, %s54
      %p68 = scmp.eq.s32.totalorder %s46, 1
      %p69 = por %p67, %p68
      %p71 = scmp.ne.s32.totalorder %s54, %s70
      %p72 = scmp.eq.s32.totalorder %s46, 0
      %p73 = por %p71, %p72
      %s75 = sadd.s32 %s74, 1
      %p78 = scmp.eq.s32.totalorder %s40, 1
      %p79 = scmp.ne.s32.totalorder %s74, %s76
      %p80 = scmp.eq.s32.totalorder %s40, 0
      %p81 = por %p79, %p80
      %p82 = scmp.ne.s32.totalorder %s74, %s76
      %p83 = scmp.eq.s32.totalorder %s45, 1
      %p84 = por %p82, %p83
      %p85 = scmp.ne.s32.totalorder %s76, %s77
      %p86 = scmp.eq.s32.totalorder %s45, 0
      %p87 = por %p85, %p86
      %p88 = scmp.ne.s32.totalorder %s76, %s77
      %p89 = scmp.eq.s32.totalorder %s46, 1
      %p90 = por %p88, %p89
      %p92 = scmp.ne.s32.totalorder %s77, %s91
      %p93 = scmp.eq.s32.totalorder %s46, 0
      %p94 = por %p92, %p93
      %s96 = sadd.s32 %s95, 1
      %p99 = scmp.eq.s32.totalorder %s40, 1
      %p100 = scmp.ne.s32.totalorder %s95, %s97
      %p101 = scmp.eq.s32.totalorder %s40, 0
      %p102 = por %p100, %p101
      %p103 = scmp.ne.s32.totalorder %s95, %s97
      %p104 = scmp.eq.s32.totalorder %s45, 1
      %p105 = por %p103, %p104
      %p106 = scmp.ne.s32.totalorder %s97, %s98
      %p107 = scmp.eq.s32.totalorder %s45, 0
      %p108 = por %p106, %p107
      %p109 = scmp.ne.s32.totalorder %s97, %s98
      %p110 = scmp.eq.s32.totalorder %s46, 1
      %p111 = por %p109, %p110
      %p113 = scmp.ne.s32.totalorder %s98, %s112
      %p114 = scmp.eq.s32.totalorder %s46, 0
      %p115 = por %p113, %p114
      %s117 = sadd.s32 %s116, 1
      %p120 = scmp.eq.s32.totalorder %s40, 1
      %p121 = scmp.ne.s32.totalorder %s116, %s118
      %p122 = scmp.eq.s32.totalorder %s40, 0
      %p123 = por %p121, %p122
      %p124 = scmp.ne.s32.totalorder %s116, %s118
      %p125 = scmp.eq.s32.totalorder %s45, 1
      %p126 = por %p124, %p125
      %p127 = scmp.ne.s32.totalorder %s118, %s119
      %p128 = scmp.eq.s32.totalorder %s45, 0
      %p129 = por %p127, %p128
      %p130 = scmp.ne.s32.totalorder %s118, %s119
      %p131 = scmp.eq.s32.totalorder %s46, 1
      %p132 = por %p130, %p131
      %p134 = scmp.ne.s32.totalorder %s119, %s133
      %p135 = scmp.eq.s32.totalorder %s46, 0
      %p136 = por %p134, %p135
      %s138 = sadd.s32 %s137, 1
      %p141 = scmp.eq.s32.totalorder %s40, 1
      %p142 = scmp.ne.s32.totalorder %s137, %s139
      %p143 = scmp.eq.s32.totalorder %s40, 0
      %p144 = por %p142, %p143
      %p145 = scmp.ne.s32.totalorder %s137, %s139
      %p146 = scmp.eq.s32.totalorder %s45, 1
      %p147 = por %p145, %p146
      %p148 = scmp.ne.s32.totalorder %s139, %s140
      %p149 = scmp.eq.s32.totalorder %s45, 0
      %p150 = por %p148, %p149
      %p151 = scmp.ne.s32.totalorder %s139, %s140
      %p152 = scmp.eq.s32.totalorder %s46, 1
      %p153 = por %p151, %p152
      %p155 = scmp.ne.s32.totalorder %s140, %s154
      %p156 = scmp.eq.s32.totalorder %s46, 0
      %p157 = por %p155, %p156
      %s159 = sadd.s32 %s158, 1
      %p162 = scmp.eq.s32.totalorder %s40, 1
      %p163 = scmp.ne.s32.totalorder %s158, %s160
      %p164 = scmp.eq.s32.totalorder %s40, 0
      %p165 = por %p163, %p164
      %p166 = scmp.ne.s32.totalorder %s158, %s160
      %p167 = scmp.eq.s32.totalorder %s45, 1
      %p168 = por %p166, %p167
      %p169 = scmp.ne.s32.totalorder %s160, %s161
      %p170 = scmp.eq.s32.totalorder %s45, 0
      %p171 = por %p169, %p170
      %p172 = scmp.ne.s32.totalorder %s160, %s161
      %p173 = scmp.eq.s32.totalorder %s46, 1
      %p174 = por %p172, %p173
      %p176 = scmp.ne.s32.totalorder %s161, %s175
      %p177 = scmp.eq.s32.totalorder %s46, 0
      %p178 = por %p176, %p177
      %s180 = sadd.s32 %s179, 1
      %p183 = scmp.eq.s32.totalorder %s40, 1
      %p184 = scmp.ne.s32.totalorder %s179, %s181
      %p185 = scmp.eq.s32.totalorder %s40, 0
      %p186 = por %p184, %p185
      %p187 = scmp.ne.s32.totalorder %s179, %s181
      %p188 = scmp.eq.s32.totalorder %s45, 1
      %p189 = por %p187, %p188
      %p190 = scmp.ne.s32.totalorder %s181, %s182
      %p191 = scmp.eq.s32.totalorder %s45, 0
      %p192 = por %p190, %p191
      %p193 = scmp.ne.s32.totalorder %s181, %s182
      %p194 = scmp.eq.s32.totalorder %s46, 1
      %p195 = por %p193, %p194
      %p197 = scmp.ne.s32.totalorder %s182, %s196
      %p198 = scmp.eq.s32.totalorder %s46, 0
      %p199 = por %p197, %p198
      %s201 = sadd.s32 %s200, 1
      %p204 = scmp.eq.s32.totalorder %s40, 1
      %p205 = scmp.ne.s32.totalorder %s200, %s202
      %p206 = scmp.eq.s32.totalorder %s40, 0
      %p207 = por %p205, %p206
      %p208 = scmp.ne.s32.totalorder %s200, %s202
      %p209 = scmp.eq.s32.totalorder %s45, 1
      %p210 = por %p208, %p209
      %p211 = scmp.ne.s32.totalorder %s202, %s203
      %p212 = scmp.eq.s32.totalorder %s45, 0
      %p213 = por %p211, %p212
      %p214 = scmp.ne.s32.totalorder %s202, %s203
      %p215 = scmp.eq.s32.totalorder %s46, 1
      %p216 = por %p214, %p215
      %p218 = scmp.ne.s32.totalorder %s203, %s217
      %p219 = scmp.eq.s32.totalorder %s46, 0
      %p220 = por %p218, %p219
      %s222 = sadd.s32 %s221, 1
      %p225 = scmp.eq.s32.totalorder %s40, 1
      %p226 = scmp.ne.s32.totalorder %s221, %s223
      %p227 = scmp.eq.s32.totalorder %s40, 0
      %p228 = por %p226, %p227
      %p229 = scmp.ne.s32.totalorder %s221, %s223
      %p230 = scmp.eq.s32.totalorder %s45, 1
      %p231 = por %p229, %p230
      %p232 = scmp.ne.s32.totalorder %s223, %s224
      %p233 = scmp.eq.s32.totalorder %s45, 0
      %p234 = por %p232, %p233
      %p235 = scmp.ne.s32.totalorder %s223, %s224
      %p236 = scmp.eq.s32.totalorder %s46, 1
      %p237 = por %p235, %p236
      %p239 = scmp.ne.s32.totalorder %s224, %s238
      %p240 = scmp.eq.s32.totalorder %s46, 0
      %p241 = por %p239, %p240
      %s243 = sadd.s32 %s242, 1
      %p246 = scmp.eq.s32.totalorder %s40, 1
      %p247 = scmp.ne.s32.totalorder %s242, %s244
      %p248 = scmp.eq.s32.totalorder %s40, 0
      %p249 = por %p247, %p248
      %p250 = scmp.ne.s32.totalorder %s242, %s244
      %p251 = scmp.eq.s32.totalorder %s45, 1
      %p252 = por %p250, %p251
      %p253 = scmp.ne.s32.totalorder %s244, %s245
      %p254 = scmp.eq.s32.totalorder %s45, 0
      %p255 = por %p253, %p254
      %p256 = scmp.ne.s32.totalorder %s244, %s245
      %p257 = scmp.eq.s32.totalorder %s46, 1
      %p258 = por %p256, %p257
      %p260 = scmp.ne.s32.totalorder %s245, %s259
      %p261 = scmp.eq.s32.totalorder %s46, 0
      %p262 = por %p260, %p261
      %s264 = sadd.s32 %s263, 1
      %p267 = scmp.eq.s32.totalorder %s40, 1
      %p268 = scmp.ne.s32.totalorder %s263, %s265
      %p269 = scmp.eq.s32.totalorder %s40, 0
      %p270 = por %p268, %p269
      %p271 = scmp.ne.s32.totalorder %s263, %s265
      %p272 = scmp.eq.s32.totalorder %s45, 1
      %p273 = por %p271, %p272
      %p274 = scmp.ne.s32.totalorder %s265, %s266
      %p275 = scmp.eq.s32.totalorder %s45, 0
      %p276 = por %p274, %p275
      %p277 = scmp.ne.s32.totalorder %s265, %s266
      %p278 = scmp.eq.s32.totalorder %s46, 1
      %p279 = por %p277, %p278
      %p281 = scmp.ne.s32.totalorder %s266, %s280
      %p282 = scmp.eq.s32.totalorder %s46, 0
      %p283 = por %p281, %p282
      %s285 = sadd.s32 %s284, 1
      %p288 = scmp.eq.s32.totalorder %s40, 1
      %p289 = scmp.ne.s32.totalorder %s284, %s286
      %p290 = scmp.eq.s32.totalorder %s40, 0
      %p291 = por %p289, %p290
      %p292 = scmp.ne.s32.totalorder %s284, %s286
      %p293 = scmp.eq.s32.totalorder %s45, 1
      %p294 = por %p292, %p293
      %p295 = scmp.ne.s32.totalorder %s286, %s287
      %p296 = scmp.eq.s32.totalorder %s45, 0
      %p297 = por %p295, %p296
      %p298 = scmp.ne.s32.totalorder %s286, %s287
      %p299 = scmp.eq.s32.totalorder %s46, 1
      %p300 = por %p298, %p299
      %p302 = scmp.ne.s32.totalorder %s287, %s301
      %p303 = scmp.eq.s32.totalorder %s46, 0
      %p304 = por %p302, %p303
      %s306 = sadd.s32 %s305, 1
      %p309 = scmp.eq.s32.totalorder %s40, 1
      %p310 = scmp.ne.s32.totalorder %s305, %s307
      %p311 = scmp.eq.s32.totalorder %s40, 0
      %p312 = por %p310, %p311
      %p313 = scmp.ne.s32.totalorder %s305, %s307
      %p314 = scmp.eq.s32.totalorder %s45, 1
      %p315 = por %p313, %p314
      %p316 = scmp.ne.s32.totalorder %s307, %s308
      %p317 = scmp.eq.s32.totalorder %s45, 0
      %p318 = por %p316, %p317
      %p319 = scmp.ne.s32.totalorder %s307, %s308
      %p320 = scmp.eq.s32.totalorder %s46, 1
      %p321 = por %p319, %p320
      %p323 = scmp.ne.s32.totalorder %s308, %s322
      %p324 = scmp.eq.s32.totalorder %s46, 0
      %p325 = por %p323, %p324
      %s327 = sadd.s32 %s326, 1
      %p330 = scmp.eq.s32.totalorder %s40, 1
      %p331 = scmp.ne.s32.totalorder %s326, %s328
      %p332 = scmp.eq.s32.totalorder %s40, 0
      %p333 = por %p331, %p332
      %p334 = scmp.ne.s32.totalorder %s326, %s328
      %p335 = scmp.eq.s32.totalorder %s45, 1
      %p336 = por %p334, %p335
      %p337 = scmp.ne.s32.totalorder %s328, %s329
      %p338 = scmp.eq.s32.totalorder %s45, 0
      %p339 = por %p337, %p338
      %p340 = scmp.ne.s32.totalorder %s328, %s329
      %p341 = scmp.eq.s32.totalorder %s46, 1
      %p342 = por %p340, %p341
      %p344 = scmp.ne.s32.totalorder %s329, %s343
      %p345 = scmp.eq.s32.totalorder %s46, 0
      %p346 = por %p344, %p345
      %s348 = sadd.s32 %s347, 1
      %p351 = scmp.eq.s32.totalorder %s40, 1
      %p352 = scmp.ne.s32.totalorder %s347, %s349
      %p353 = scmp.eq.s32.totalorder %s40, 0
      %p354 = por %p352, %p353
      %p355 = scmp.ne.s32.totalorder %s347, %s349
      %p356 = scmp.eq.s32.totalorder %s45, 1
      %p357 = por %p355, %p356
      %p358 = scmp.ne.s32.totalorder %s349, %s350
      %p359 = scmp.eq.s32.totalorder %s45, 0
      %p360 = por %p358, %p359
      %p361 = scmp.ne.s32.totalorder %s349, %s350
      %p362 = scmp.eq.s32.totalorder %s46, 1
      %p363 = por %p361, %p362
      %p365 = scmp.ne.s32.totalorder %s350, %s364
      %p366 = scmp.eq.s32.totalorder %s46, 0
      %p367 = por %p365, %p366
      %s369 = sadd.s32 %s368, 1
      %p372 = scmp.eq.s32.totalorder %s40, 1
      %p373 = scmp.ne.s32.totalorder %s368, %s370
      %p374 = scmp.eq.s32.totalorder %s40, 0
      %p375 = por %p373, %p374
      %p376 = scmp.ne.s32.totalorder %s368, %s370
      %p377 = scmp.eq.s32.totalorder %s45, 1
      %p378 = por %p376, %p377
      %p379 = scmp.ne.s32.totalorder %s370, %s371
      %p380 = scmp.eq.s32.totalorder %s45, 0
      %p381 = por %p379, %p380
      %p382 = scmp.ne.s32.totalorder %s370, %s371
      %p383 = scmp.eq.s32.totalorder %s46, 1
      %p384 = por %p382, %p383
      %p386 = scmp.ne.s32.totalorder %s371, %s385
      %p387 = scmp.eq.s32.totalorder %s46, 0
      %p388 = por %p386, %p387
      %s390 = sadd.s32 %s389, 1
      %p393 = scmp.eq.s32.totalorder %s40, 1
      %p394 = scmp.ne.s32.totalorder %s389, %s391
      %p395 = scmp.eq.s32.totalorder %s40, 0
      %p396 = por %p394, %p395
      %p397 = scmp.ne.s32.totalorder %s389, %s391
      %p398 = scmp.eq.s32.totalorder %s45, 1
      %p399 = por %p397, %p398
      %p400 = scmp.ne.s32.totalorder %s391, %s392
      %p401 = scmp.eq.s32.totalorder %s45, 0
      %p402 = por %p400, %p401
      %p403 = scmp.ne.s32.totalorder %s391, %s392
      %p404 = scmp.eq.s32.totalorder %s46, 1
      %p405 = por %p403, %p404
      %p407 = scmp.ne.s32.totalorder %s392, %s406
      %p408 = scmp.eq.s32.totalorder %s46, 0
      %p409 = por %p407, %p408
      %s411 = sadd.s32 %s410, 1
      %p414 = scmp.eq.s32.totalorder %s40, 1
      %p415 = scmp.ne.s32.totalorder %s410, %s412
      %p416 = scmp.eq.s32.totalorder %s40, 0
      %p417 = por %p415, %p416
      %p418 = scmp.ne.s32.totalorder %s410, %s412
      %p419 = scmp.eq.s32.totalorder %s45, 1
      %p420 = por %p418, %p419
      %p421 = scmp.ne.s32.totalorder %s412, %s413
      %p422 = scmp.eq.s32.totalorder %s45, 0
      %p423 = por %p421, %p422
      %p424 = scmp.ne.s32.totalorder %s412, %s413
      %p425 = scmp.eq.s32.totalorder %s46, 1
      %p426 = por %p424, %p425
      %p428 = scmp.ne.s32.totalorder %s413, %s427
      %p429 = scmp.eq.s32.totalorder %s46, 0
      %p430 = por %p428, %p429
      %s432 = sadd.s32 %s431, 1
      %p435 = scmp.eq.s32.totalorder %s40, 1
      %p436 = scmp.ne.s32.totalorder %s431, %s433
      %p437 = scmp.eq.s32.totalorder %s40, 0
      %p438 = por %p436, %p437
      %p439 = scmp.ne.s32.totalorder %s431, %s433
      %p440 = scmp.eq.s32.totalorder %s45, 1
      %p441 = por %p439, %p440
      %p442 = scmp.ne.s32.totalorder %s433, %s434
      %p443 = scmp.eq.s32.totalorder %s45, 0
      %p444 = por %p442, %p443
      %p445 = scmp.ne.s32.totalorder %s433, %s434
      %p446 = scmp.eq.s32.totalorder %s46, 1
      %p447 = por %p445, %p446
      %p449 = scmp.ne.s32.totalorder %s434, %s448
      %p450 = scmp.eq.s32.totalorder %s46, 0
      %p451 = por %p449, %p450
      %s452 = ssub.s32 %s40, %s47
      %p453 = scmp.eq.s32.totalorder %s452, 0
      %s455 = sadd.s32 %s454, 1
      %s456 = scalar_select %p453, %s454, %s455
      %p459 = pneg %p453
      %p460 = scmp.eq.s32.totalorder %s40, 1
      %p461 = por %p459, %p460
      %p462 = scmp.ne.s32.totalorder %s454, %s457
      %p463 = scmp.eq.s32.totalorder %s40, 0
      %p464 = por %p462, %p463
      %p465 = scmp.ne.s32.totalorder %s454, %s457
      %p466 = scmp.eq.s32.totalorder %s45, 1
      %p467 = por %p465, %p466
      %p468 = scmp.ne.s32.totalorder %s457, %s458
      %p469 = scmp.eq.s32.totalorder %s45, 0
      %p470 = por %p468, %p469
      %p471 = scmp.ne.s32.totalorder %s457, %s458
      %p472 = scmp.eq.s32.totalorder %s46, 1
      %p473 = por %p471, %p472
      %p475 = scmp.ne.s32.totalorder %s458, %s474
      %p476 = scmp.eq.s32.totalorder %s46, 0
      %p477 = por %p475, %p476
      %s478 = ssub.s32 %s40, %s47
      %p479 = scmp.eq.s32.totalorder %s478, 0
      %s481 = sadd.s32 %s480, 1
      %s482 = scalar_select %p479, %s480, %s481
      %p485 = pneg %p479
      %p486 = scmp.eq.s32.totalorder %s40, 1
      %p487 = por %p485, %p486
      %p488 = scmp.ne.s32.totalorder %s480, %s483
      %p489 = scmp.eq.s32.totalorder %s40, 0
      %p490 = por %p488, %p489
      %p491 = scmp.ne.s32.totalorder %s480, %s483
      %p492 = scmp.eq.s32.totalorder %s45, 1
      %p493 = por %p491, %p492
      %p494 = scmp.ne.s32.totalorder %s483, %s484
      %p495 = scmp.eq.s32.totalorder %s45, 0
      %p496 = por %p494, %p495
      %p497 = scmp.ne.s32.totalorder %s483, %s484
      %p498 = scmp.eq.s32.totalorder %s46, 1
      %p499 = por %p497, %p498
      %p501 = scmp.ne.s32.totalorder %s484, %s500
      %p502 = scmp.eq.s32.totalorder %s46, 0
      %p503 = por %p501, %p502
      %p504 = scmp.le.s32.totalorder 1, %s40
      %p505 = scmp.lt.s32.totalorder %s40, 3
      %p506 = pnand %p504, %p505
      %p507 = pneg %p506
      // Predicated region
      $region9: #{_lambda_.1} parent=5 // pred_check
        _
      $region10: #{_lambda_.1} parent=5 // pred_check_branch
        %509 = sbr.rel (%p506) target = $region12
      $region11: #{_lambda_.1} parent=5 // pred_region
        %s510 = ssub.s32 %s40, 1
        // Predicated region
        $region13: #{_lambda_.1} parent=11 // pred_check
          %p511 = pneg %p87
        $region14: #{_lambda_.1} parent=11 // pred_check_branch
          %513 = sbr.rel (%p511) target = $region16
        $region15: #{_lambda_.1} parent=11 // pred_region
          %515 = vsyncadd [#allocation7], 0
          %s516 = sshll.u32 %s1, 4
          %s517 = int_to_ptr.hbm [resolvable:$true] %s516
          %s518 = sshll.u32 [#allocation6], 4
          %s519 = int_to_ptr.vmem [resolvable:$true] %s518
          %524 = dma.hbm_to_vmem [thread:$0]  %s517, 1280, %s519, [#allocation7], 128, 128, 8
        $region16: #{_lambda_.1} parent=11 // pred_fallthru
          _
        // Predicated region
        $region17: #{_lambda_.1} parent=11 // pred_check
          %p525 = pneg %p108
        $region18: #{_lambda_.1} parent=11 // pred_check_branch
          %527 = sbr.rel (%p525) target = $region20
        $region19: #{_lambda_.1} parent=11 // pred_region
          _
        $region20: #{_lambda_.1} parent=11 // pred_fallthru
          _
        // Predicated region
        $region21: #{_lambda_.1} parent=11 // pred_check
          %p528 = pneg %p129
        $region22: #{_lambda_.1} parent=11 // pred_check_branch
          %530 = sbr.rel (%p528) target = $region24
        $region23: #{_lambda_.1} parent=11 // pred_region
          %532 = vsyncadd [#allocation7], 0
          %s534 = sshll.u32 %s3, 4
          %s535 = int_to_ptr.hbm [resolvable:$true] %s534
          %s536 = sshll.u32 [#allocation8], 4
          %s537 = int_to_ptr.vmem [resolvable:$true] %s536
          %539 = dma.hbm_to_vmem [thread:$0]  %s535, 16, %s537, [#allocation7]
        $region24: #{_lambda_.1} parent=11 // pred_fallthru
          _
        // Predicated region
        $region25: #{_lambda_.1} parent=11 // pred_check
          %p540 = pneg %p150
        $region26: #{_lambda_.1} parent=11 // pred_check_branch
          %542 = sbr.rel (%p540) target = $region28
        $region27: #{_lambda_.1} parent=11 // pred_region
          %544 = vsyncadd [#allocation10], 0
          %s545 = sshll.u32 %s4, 4
          %s546 = int_to_ptr.hbm [resolvable:$true] %s545
          %s547 = sshll.u32 [#allocation9], 4
          %s548 = int_to_ptr.vmem [resolvable:$true] %s547
          %553 = dma.hbm_to_vmem [thread:$0]  %s546, 1280, %s548, [#allocation10], 128, 128, 8
        $region28: #{_lambda_.1} parent=11 // pred_fallthru
          _
        // Predicated region
        $region29: #{_lambda_.1} parent=11 // pred_check
          %p554 = pneg %p171
        $region30: #{_lambda_.1} parent=11 // pred_check_branch
          %556 = sbr.rel (%p554) target = $region32
        $region31: #{_lambda_.1} parent=11 // pred_region
          _
        $region32: #{_lambda_.1} parent=11 // pred_fallthru
          _
        // Predicated region
        $region33: #{_lambda_.1} parent=11 // pred_check
          %p557 = pneg %p192
        $region34: #{_lambda_.1} parent=11 // pred_check_branch
          %559 = sbr.rel (%p557) target = $region36
        $region35: #{_lambda_.1} parent=11 // pred_region
          _
        $region36: #{_lambda_.1} parent=11 // pred_fallthru
          _
        // Predicated region
        $region37: #{_lambda_.1} parent=11 // pred_check
          %p560 = pneg %p213
        $region38: #{_lambda_.1} parent=11 // pred_check_branch
          %562 = sbr.rel (%p560) target = $region40
        $region39: #{_lambda_.1} parent=11 // pred_region
          %564 = vsyncadd [#allocation10], 0
          %s565 = sshll.u32 %s7, 4
          %s566 = int_to_ptr.hbm [resolvable:$true] %s565
          %s567 = sshll.u32 [#allocation11], 4
          %s568 = int_to_ptr.vmem [resolvable:$true] %s567
          %573 = dma.hbm_to_vmem [thread:$0]  %s566, 256, %s568, [#allocation10], 128, 128, 8
        $region40: #{_lambda_.1} parent=11 // pred_fallthru
          _
        // Predicated region
        $region41: #{_lambda_.1} parent=11 // pred_check
          %p574 = pneg %p234
        $region42: #{_lambda_.1} parent=11 // pred_check_branch
          %576 = sbr.rel (%p574) target = $region44
        $region43: #{_lambda_.1} parent=11 // pred_region
          _
        $region44: #{_lambda_.1} parent=11 // pred_fallthru
          _
        // Predicated region
        $region45: #{_lambda_.1} parent=11 // pred_check
          %p577 = pneg %p255
        $region46: #{_lambda_.1} parent=11 // pred_check_branch
          %579 = sbr.rel (%p577) target = $region48
        $region47: #{_lambda_.1} parent=11 // pred_region
          %581 = vsyncadd [#allocation13], 0
          %s582 = sshll.u32 %s9, 4
          %s583 = int_to_ptr.hbm [resolvable:$true] %s582
          %s584 = sshll.u32 [#allocation12], 4
          %s585 = int_to_ptr.vmem [resolvable:$true] %s584
          %590 = dma.hbm_to_vmem [thread:$0]  %s583, 1280, %s585, [#allocation13], 128, 128, 8
        $region48: #{_lambda_.1} parent=11 // pred_fallthru
          _
        // Predicated region
        $region49: #{_lambda_.1} parent=11 // pred_check
          %p591 = pneg %p276
        $region50: #{_lambda_.1} parent=11 // pred_check_branch
          %593 = sbr.rel (%p591) target = $region52
        $region51: #{_lambda_.1} parent=11 // pred_region
          _
        $region52: #{_lambda_.1} parent=11 // pred_fallthru
          _
        // Predicated region
        $region53: #{_lambda_.1} parent=11 // pred_check
          %p594 = pneg %p297
        $region54: #{_lambda_.1} parent=11 // pred_check_branch
          %596 = sbr.rel (%p594) target = $region56
        $region55: #{_lambda_.1} parent=11 // pred_region
          _
        $region56: #{_lambda_.1} parent=11 // pred_fallthru
          _
        // Predicated region
        $region57: #{_lambda_.1} parent=11 // pred_check
          %p597 = pneg %p318
        $region58: #{_lambda_.1} parent=11 // pred_check_branch
          %599 = sbr.rel (%p597) target = $region60
        $region59: #{_lambda_.1} parent=11 // pred_region
          %601 = vsyncadd [#allocation13], 0
          %s602 = sshll.u32 %s12, 4
          %s603 = int_to_ptr.hbm [resolvable:$true] %s602
          %s604 = sshll.u32 [#allocation14], 4
          %s605 = int_to_ptr.vmem [resolvable:$true] %s604
          %610 = dma.hbm_to_vmem [thread:$0]  %s603, 1280, %s605, [#allocation13], 128, 128, 8
        $region60: #{_lambda_.1} parent=11 // pred_fallthru
          _
        // Predicated region
        $region61: #{_lambda_.1} parent=11 // pred_check
          %p611 = pneg %p339
        $region62: #{_lambda_.1} parent=11 // pred_check_branch
          %613 = sbr.rel (%p611) target = $region64
        $region63: #{_lambda_.1} parent=11 // pred_region
          _
        $region64: #{_lambda_.1} parent=11 // pred_fallthru
          _
        // Predicated region
        $region65: #{_lambda_.1} parent=11 // pred_check
          %p614 = pneg %p360
        $region66: #{_lambda_.1} parent=11 // pred_check_branch
          %616 = sbr.rel (%p614) target = $region68
        $region67: #{_lambda_.1} parent=11 // pred_region
          _
        $region68: #{_lambda_.1} parent=11 // pred_fallthru
          _
        // Predicated region
        $region69: #{_lambda_.1} parent=11 // pred_check
          %p617 = pneg %p381
        $region70: #{_lambda_.1} parent=11 // pred_check_branch
          %619 = sbr.rel (%p617) target = $region72
        $region71: #{_lambda_.1} parent=11 // pred_region
          %621 = vsyncadd [#allocation16], 0
          %s622 = sshll.u32 %s15, 4
          %s623 = int_to_ptr.hbm [resolvable:$true] %s622
          %s624 = sshll.u32 [#allocation15], 4
          %s625 = int_to_ptr.vmem [resolvable:$true] %s624
          %630 = dma.hbm_to_vmem [thread:$0]  %s623, 256, %s625, [#allocation16], 128, 128, 8
        $region72: #{_lambda_.1} parent=11 // pred_fallthru
          _
        // Predicated region
        $region73: #{_lambda_.1} parent=11 // pred_check
          %p631 = pneg %p402
        $region74: #{_lambda_.1} parent=11 // pred_check_branch
          %633 = sbr.rel (%p631) target = $region76
        $region75: #{_lambda_.1} parent=11 // pred_region
          _
        $region76: #{_lambda_.1} parent=11 // pred_fallthru
          _
        // Predicated region
        $region77: #{_lambda_.1} parent=11 // pred_check
          %p634 = pneg %p423
        $region78: #{_lambda_.1} parent=11 // pred_check_branch
          %636 = sbr.rel (%p634) target = $region80
        $region79: #{_lambda_.1} parent=11 // pred_region
          %638 = vsyncadd [#allocation16], 0
          %s639 = sshll.u32 %s17, 4
          %s640 = int_to_ptr.hbm [resolvable:$true] %s639
          %s641 = sshll.u32 [#allocation17], 4
          %s642 = int_to_ptr.vmem [resolvable:$true] %s641
          %647 = dma.hbm_to_vmem [thread:$0]  %s640, 256, %s642, [#allocation16], 128, 128, 8
        $region80: #{_lambda_.1} parent=11 // pred_fallthru
          _
        // Predicated region
        $region81: #{_lambda_.1} parent=11 // pred_check
          %p648 = pneg %p444
        $region82: #{_lambda_.1} parent=11 // pred_check_branch
          %650 = sbr.rel (%p648) target = $region84
        $region83: #{_lambda_.1} parent=11 // pred_region
          _
        $region84: #{_lambda_.1} parent=11 // pred_fallthru
          _
      $region12: #{_lambda_.1} parent=5 // pred_fallthru
        _
      %p651 = scmp.lt.s32.totalorder %s40, 2
      // Predicated region
      $region85: #{_lambda_.1} parent=5 // pred_check
        %p652 = pneg %p651
      $region86: #{_lambda_.1} parent=5 // pred_check_branch
        %654 = sbr.rel (%p652) target = $region88
      $region87: #{_lambda_.1} parent=5 // pred_region
        // Predicated region
        $region89: #{_lambda_.1} parent=87 // pred_check
          %p655 = pneg %p60
        $region90: #{_lambda_.1} parent=87 // pred_check_branch
          %657 = sbr.rel (%p655) target = $region92
        $region91: #{_lambda_.1} parent=87 // pred_region
          %s658 = sand.u32 %s50, 1
          %s659 = scalar_lea.sflag [#allocation4], %s658
          %s660 = sand.u32 %s50, 1
          %s661 = smul.addr %s660, 8
          %s662 = scalar_lea.vmem [#allocation3], %s661
          %664 = vsyncadd %s659, 0
          %s665 = smul.addr %s40, 8
          %s666 = scalar_lea.hbm %s0, %s665
          %s668 = sshll.u32 %s666, 4
          %s669 = int_to_ptr.hbm [resolvable:$true] %s668
          %s670 = sshll.u32 %s662, 4
          %s671 = int_to_ptr.vmem [resolvable:$true] %s670
          %673 = dma.hbm_to_vmem [thread:$0]  %s669, 128, %s671, %s659
        $region92: #{_lambda_.1} parent=87 // pred_fallthru
          _
      $region88: #{_lambda_.1} parent=5 // pred_fallthru
        _
      %p674 = scmp.le.s32.totalorder 1, %s40
      %p675 = scmp.lt.s32.totalorder %s40, 3
      %p676 = pnand %p674, %p675
      %p677 = pneg %p676
      // Predicated region
      $region93: #{_lambda_.1} parent=5 // pred_check
        _
      $region94: #{_lambda_.1} parent=5 // pred_check_branch
        %679 = sbr.rel (%p676) target = $region96
      $region95: #{_lambda_.1} parent=5 // pred_region
        %s680 = ssub.s32 %s40, 1
        %s681 = sand.u32 %s53, 1
        %s682 = scalar_lea.sflag [#allocation4], %s681
        %s683 = sand.u32 %s53, 1
        %s684 = smul.addr %s683, 8
        %s685 = scalar_lea.vmem [#allocation3], %s684
        // Predicated region
        $region97: #{_lambda_.1} parent=95 // pred_check
          %p686 = pneg %p66
        $region98: #{_lambda_.1} parent=95 // pred_check_branch
          %688 = sbr.rel (%p686) target = $region100
        $region99: #{_lambda_.1} parent=95 // pred_region
          %690 = dma.done %s682, 128
        $region100: #{_lambda_.1} parent=95 // pred_fallthru
          _
        // Predicated region
        $region101: #{_lambda_.1} parent=95 // pred_check
          %p691 = pneg %p87
        $region102: #{_lambda_.1} parent=95 // pred_check_branch
          %693 = sbr.rel (%p691) target = $region104
        $region103: #{_lambda_.1} parent=95 // pred_region
          %695 = dma.done [#allocation7], 1280
        $region104: #{_lambda_.1} parent=95 // pred_fallthru
          _
        // Predicated region
        $region105: #{_lambda_.1} parent=95 // pred_check
          %p696 = pneg %p129
        $region106: #{_lambda_.1} parent=95 // pred_check_branch
          %698 = sbr.rel (%p696) target = $region108
        $region107: #{_lambda_.1} parent=95 // pred_region
          %700 = dma.done [#allocation7], 16
        $region108: #{_lambda_.1} parent=95 // pred_fallthru
          _
        // Predicated region
        $region109: #{_lambda_.1} parent=95 // pred_check
          %p701 = pneg %p150
        $region110: #{_lambda_.1} parent=95 // pred_check_branch
          %703 = sbr.rel (%p701) target = $region112
        $region111: #{_lambda_.1} parent=95 // pred_region
          %705 = dma.done [#allocation10], 1280
        $region112: #{_lambda_.1} parent=95 // pred_fallthru
          _
        // Predicated region
        $region113: #{_lambda_.1} parent=95 // pred_check
          %p706 = pneg %p213
        $region114: #{_lambda_.1} parent=95 // pred_check_branch
          %708 = sbr.rel (%p706) target = $region116
        $region115: #{_lambda_.1} parent=95 // pred_region
          %710 = dma.done [#allocation10], 256
        $region116: #{_lambda_.1} parent=95 // pred_fallthru
          _
        // Predicated region
        $region117: #{_lambda_.1} parent=95 // pred_check
          %p711 = pneg %p255
        $region118: #{_lambda_.1} parent=95 // pred_check_branch
          %713 = sbr.rel (%p711) target = $region120
        $region119: #{_lambda_.1} parent=95 // pred_region
          %715 = dma.done [#allocation13], 1280
        $region120: #{_lambda_.1} parent=95 // pred_fallthru
          _
        // Predicated region
        $region121: #{_lambda_.1} parent=95 // pred_check
          %p716 = pneg %p318
        $region122: #{_lambda_.1} parent=95 // pred_check_branch
          %718 = sbr.rel (%p716) target = $region124
        $region123: #{_lambda_.1} parent=95 // pred_region
          %720 = dma.done [#allocation13], 1280
        $region124: #{_lambda_.1} parent=95 // pred_fallthru
          _
        // Predicated region
        $region125: #{_lambda_.1} parent=95 // pred_check
          %p721 = pneg %p381
        $region126: #{_lambda_.1} parent=95 // pred_check_branch
          %723 = sbr.rel (%p721) target = $region128
        $region127: #{_lambda_.1} parent=95 // pred_region
          %725 = dma.done [#allocation16], 256
        $region128: #{_lambda_.1} parent=95 // pred_fallthru
          _
        // Predicated region
        $region129: #{_lambda_.1} parent=95 // pred_check
          %p726 = pneg %p423
        $region130: #{_lambda_.1} parent=95 // pred_check_branch
          %728 = sbr.rel (%p726) target = $region132
        $region131: #{_lambda_.1} parent=95 // pred_region
          %730 = dma.done [#allocation16], 256
        $region132: #{_lambda_.1} parent=95 // pred_fallthru
          _
        %s731 = sand.u32 %s53, 1
        %s732 = scalar_lea.sflag [#allocation4], %s731
        %s733 = sand.u32 %s53, 1
        %s734 = smul.addr %s733, 8
        %s735 = scalar_lea.vmem [#allocation3], %s734
        %p736 = pneg %p66
        %p737 = pneg %p63
        %p738 = pneg %p87
        %p739 = pneg %p84
        %p740 = pneg %p108
        %p741 = pneg %p105
        %p742 = pneg %p129
        %p743 = pneg %p126
        %p744 = pneg %p150
        %p745 = pneg %p147
        %p746 = pneg %p171
        %p747 = pneg %p168
        %p748 = pneg %p192
        %p749 = pneg %p189
        %p750 = pneg %p213
        %p751 = pneg %p210
        %p752 = pneg %p234
        %p753 = pneg %p231
        %p754 = pneg %p255
        %p755 = pneg %p252
        %p756 = pneg %p276
        %p757 = pneg %p273
        %p758 = pneg %p297
        %p759 = pneg %p294
        %p760 = pneg %p318
        %p761 = pneg %p315
        %p762 = pneg %p339
        %p763 = pneg %p336
        %p764 = pneg %p360
        %p765 = pneg %p357
        %p766 = pneg %p381
        %p767 = pneg %p378
        %p768 = pneg %p402
        %p769 = pneg %p399
        %p770 = pneg %p423
        %p771 = pneg %p420
        %p772 = pneg %p444
        %p773 = pneg %p441
        %p774 = pneg %p470
        %p775 = pneg %p467
        %s776 = sand.u32 %s457, 1
        %s777 = scalar_lea.sflag [#allocation5], %s776
        %s778 = sand.u32 %s457, 1
        %s779 = smul.addr %s778, 8
        %s780 = scalar_lea.vmem [#allocation18], %s779
        %p781 = pneg %p496
        %p782 = pneg %p493
        %s783 = sand.u32 %s483, 1
        %s784 = scalar_lea.sflag [#allocation20], %s783
        %s785 = sand.u32 %s483, 1
        %s786 = smul.addr %s785, 8
        %s787 = scalar_lea.vmem [#allocation19], %s786
        %v788 = vld [vmem:[%s685] sm:$0xff]
        %vm789 = vcmask 125952
        %790 = vst.msk [vmem:[#allocation2] sm:$0xf] %vm789, 0.0
        %791 = vst.msk [vmem:[#allocation2 + $0x4] sm:$0xf] %vm789, %v788
        %vm792 = vcmask 256128
        %793 = vst.msk [vmem:[#allocation2] sm:$0x7] %vm792, 0.0
        %795 = vrot.lane.b32.xlu0 %v788, 16
        %v796 = vpop.permute.xlu0 %795
        %vm798 = vcmask 258176
        %799 = vst.msk [vmem:[#allocation2 + $0x3] sm:$0x1f] %vm798, %v796
        %vm800 = vcmask 386304
        %801 = vst.msk [vmem:[#allocation2] sm:$0x3] %vm800, 0.0
        %802 = vrot.lane.b32.xlu0 %v788, 32
        %v803 = vpop.permute.xlu0 %802
        %vm805 = vcmask 390400
        %806 = vst.msk [vmem:[#allocation2 + $0x2] sm:$0x3f] %vm805, %v803
        %vm807 = vcmask 516480
        %808 = vst.msk [vmem:[#allocation2] sm:$0x1] %vm807, 0.0
        %809 = vrot.lane.b32.xlu0 %v788, 48
        %v810 = vpop.permute.xlu0 %809
        %vm812 = vcmask 522624
        %813 = vst.msk [vmem:[#allocation2 + $0x1] sm:$0x7f] %vm812, %v810
        %814 = vrot.lane.b32.xlu0 %v788, 64
        %v815 = vpop.permute.xlu0 %814
        %vm817 = vcmask 654848
        %818 = vst.msk [vmem:[#allocation2] sm:$0xff] %vm817, %v815
        %v819 = vld [vmem:[#allocation2] sm:$0xff]
        %v820 = vld [vmem:[#allocation6] sm:$0xff]
        %v821 = vld [vmem:[#allocation6 + $0x8] sm:$0xff]
        %v822 = vld [vmem:[#allocation6 + $0x10] sm:$0xff]
        %v823 = vld [vmem:[#allocation6 + $0x18] sm:$0xff]
        %v824 = vld [vmem:[#allocation6 + $0x20] sm:$0xff]
        %v825 = vld [vmem:[#allocation6 + $0x28] sm:$0xff]
        %v826 = vld [vmem:[#allocation6 + $0x30] sm:$0xff]
        %v827 = vld [vmem:[#allocation6 + $0x38] sm:$0xff]
        %v828 = vld [vmem:[#allocation6 + $0x40] sm:$0xff]
        %v829 = vld [vmem:[#allocation6 + $0x48] sm:$0xff]
        %vm830 = vcmask 654336
        %v832 = vsel %vm830, %v819, 0
        %834 = vmatpush.msra.mxu0 0.0
        %835 = vmatpush.msra.mxu0 0.0
        %836 = vmatpush.msra.mxu0 0.0
        %837 = vmatpush.msra.mxu0 0.0
        %838 = vmatpush.msra.mxu0 0.0
        %839 = vmatpush.msra.mxu0 0.0
        %840 = vmatpush.msra.mxu0 %v829
        %841 = vmatpush.msra.mxu0 %v828
        %842 = vmatpush.msra.mxu0 %v827
        %843 = vmatpush.msra.mxu0 %v826
        %844 = vmatpush.msra.mxu0 %v825
        %845 = vmatpush.msra.mxu0 %v824
        %846 = vmatpush.msra.mxu0 %v823
        %847 = vmatpush.msra.mxu0 %v822
        %848 = vmatpush.msra.mxu0 %v821
        %849 = vmatpush.msra.mxu0 %v820
        %850 = vmatmul.f32.gmra.mxu0 %v832
        %v851 = vpop.f32.mrf.mxu0
        %v852 = vadd.f32 0.0, %v851
        %853 = vdwg.mxu0
        %v854 = vld [vmem:[%s2] sm:$0x1]
        %v856 = vperm.slane %v854, 0
        %v858 = vmul.f32 %v852, %v856
        %v859 = vld [vmem:[#allocation8] sm:$0x1]
        %v861 = vperm.slane %v859, 0
        %v863 = vadd.f32 %v858, %v861
        %v864 = vmax.f32 %v863, 0.0
        %865 = vst.msk [vmem:[#allocation2] sm:$0xf] %vm789, 0.0
        %866 = vst.msk [vmem:[#allocation2 + $0x4] sm:$0xf] %vm789, %v864
        %867 = vst.msk [vmem:[#allocation2] sm:$0x7] %vm792, 0.0
        %869 = vrot.lane.b32.xlu0 %v864, 16
        %v870 = vpop.permute.xlu0 %869
        %872 = vst.msk [vmem:[#allocation2 + $0x3] sm:$0x1f] %vm798, %v870
        %873 = vst.msk [vmem:[#allocation2] sm:$0x3] %vm800, 0.0
        %874 = vrot.lane.b32.xlu0 %v864, 32
        %v875 = vpop.permute.xlu0 %874
        %877 = vst.msk [vmem:[#allocation2 + $0x2] sm:$0x3f] %vm805, %v875
        %878 = vst.msk [vmem:[#allocation2] sm:$0x1] %vm807, 0.0
        %879 = vrot.lane.b32.xlu0 %v864, 48
        %v880 = vpop.permute.xlu0 %879
        %882 = vst.msk [vmem:[#allocation2 + $0x1] sm:$0x7f] %vm812, %v880
        %883 = vrot.lane.b32.xlu0 %v864, 64
        %v884 = vpop.permute.xlu0 %883
        %886 = vst.msk [vmem:[#allocation2] sm:$0xff] %vm817, %v884
        %v887 = vld [vmem:[#allocation2] sm:$0xff]
        %v888 = vld [vmem:[#allocation9] sm:$0xff]
        %v889 = vld [vmem:[#allocation9 + $0x8] sm:$0xff]
        %v890 = vld [vmem:[#allocation9 + $0x10] sm:$0xff]
        %v891 = vld [vmem:[#allocation9 + $0x18] sm:$0xff]
        %v892 = vld [vmem:[#allocation9 + $0x20] sm:$0xff]
        %v893 = vld [vmem:[#allocation9 + $0x28] sm:$0xff]
        %v894 = vld [vmem:[#allocation9 + $0x30] sm:$0xff]
        %v895 = vld [vmem:[#allocation9 + $0x38] sm:$0xff]
        %v896 = vld [vmem:[#allocation9 + $0x40] sm:$0xff]
        %v897 = vld [vmem:[#allocation9 + $0x48] sm:$0xff]
        %v899 = vsel %vm830, %v887, 0
        %901 = vmatpush.msra.mxu0 0.0
        %902 = vmatpush.msra.mxu0 0.0
        %903 = vmatpush.msra.mxu0 0.0
        %904 = vmatpush.msra.mxu0 0.0
        %905 = vmatpush.msra.mxu0 0.0
        %906 = vmatpush.msra.mxu0 0.0
        %907 = vmatpush.msra.mxu0 %v897
        %908 = vmatpush.msra.mxu0 %v896
        %909 = vmatpush.msra.mxu0 %v895
        %910 = vmatpush.msra.mxu0 %v894
        %911 = vmatpush.msra.mxu0 %v893
        %912 = vmatpush.msra.mxu0 %v892
        %913 = vmatpush.msra.mxu0 %v891
        %914 = vmatpush.msra.mxu0 %v890
        %915 = vmatpush.msra.mxu0 %v889
        %916 = vmatpush.msra.mxu0 %v888
        %917 = vmatmul.f32.gmra.mxu0 %v899
        %v918 = vpop.f32.mrf.mxu0
        %v919 = vadd.f32 0.0, %v918
        %920 = vdwg.mxu0
        %v921 = vld [vmem:[%s5] sm:$0x1]
        %v923 = vperm.slane %v921, 0
        %v925 = vmul.f32 %v919, %v923
        %v926 = vld [vmem:[%s6] sm:$0x1]
        %v928 = vperm.slane %v926, 0
        %v930 = vadd.f32 %v925, %v928
        %v931 = vmax.f32 %v930, 0.0
        %v932 = vld [vmem:[#allocation11] sm:$0xff]
        %v933 = vld [vmem:[#allocation11 + $0x8] sm:$0xff]
        %v934 = vld [vmem:[%s8] sm:$0x1]
        %v936 = vperm.slane %v934, 0
        %vm938 = vcmask 130048
        %v939 = vsel %vm938, %v788, 0
        %941 = vmatpush.msra.mxu0 0.0
        %942 = vmatpush.msra.mxu0 0.0
        %943 = vmatpush.msra.mxu0 0.0
        %944 = vmatpush.msra.mxu0 0.0
        %945 = vmatpush.msra.mxu0 0.0
        %946 = vmatpush.msra.mxu0 0.0
        %947 = vmatpush.msra.mxu0 0.0
        %948 = vmatpush.msra.mxu0 0.0
        %949 = vmatpush.msra.mxu0 0.0
        %950 = vmatpush.msra.mxu0 0.0
        %951 = vmatpush.msra.mxu0 0.0
        %952 = vmatpush.msra.mxu0 0.0
        %953 = vmatpush.msra.mxu0 0.0
        %954 = vmatpush.msra.mxu0 0.0
        %955 = vmatpush.msra.mxu0 %v933
        %956 = vmatpush.msra.mxu0 %v932
        %957 = vmatmul.f32.gmra.mxu0 %v939
        %v958 = vpop.f32.mrf.mxu0
        %v959 = vadd.f32 %v936, %v958
        %960 = vdwg.mxu0
        %v961 = vadd.f32 %v931, %v959
        %v962 = vmax.f32 %v961, 0.0
        %963 = vst.msk [vmem:[#allocation2] sm:$0xff] %vm938, 0.0
        %vm964 = vcmask 259200
        %965 = vst.msk [vmem:[#allocation2] sm:$0x3f] %vm964, 0.0
        %967 = vrot.lane.b32.xlu0 %v962, 16
        %v968 = vpop.permute.xlu0 %967
        %vm970 = vcmask 255104
        %971 = vst.msk [vmem:[#allocation2 + $0x6] sm:$0x3] %vm970, %v968
        %vm972 = vcmask 388352
        %973 = vst.msk [vmem:[#allocation2] sm:$0xf] %vm972, 0.0
        %974 = vrot.lane.b32.xlu0 %v962, 32
        %v975 = vpop.permute.xlu0 %974
        %977 = vst.msk [vmem:[#allocation2 + $0x4] sm:$0xf] %vm972, %v975
        %vm978 = vcmask 517504
        %979 = vst.msk [vmem:[#allocation2] sm:$0x3] %vm978, 0.0
        %980 = vrot.lane.b32.xlu0 %v962, 48
        %v981 = vpop.permute.xlu0 %980
        %vm983 = vcmask 521600
        %984 = vst.msk [vmem:[#allocation2 + $0x2] sm:$0x3f] %vm983, %v981
        %985 = vrot.lane.b32.xlu0 %v962, 64
        %v986 = vpop.permute.xlu0 %985
        %988 = vst.msk [vmem:[#allocation2] sm:$0xff] %vm817, %v986
        %v989 = vld [vmem:[#allocation2] sm:$0xff]
        %v990 = vld [vmem:[#allocation12] sm:$0xff]
        %v991 = vld [vmem:[#allocation12 + $0x8] sm:$0xff]
        %v992 = vld [vmem:[#allocation12 + $0x10] sm:$0xff]
        %v993 = vld [vmem:[#allocation12 + $0x18] sm:$0xff]
        %v994 = vld [vmem:[#allocation12 + $0x20] sm:$0xff]
        %v995 = vld [vmem:[#allocation12 + $0x28] sm:$0xff]
        %v996 = vld [vmem:[#allocation12 + $0x30] sm:$0xff]
        %v997 = vld [vmem:[#allocation12 + $0x38] sm:$0xff]
        %v998 = vld [vmem:[#allocation12 + $0x40] sm:$0xff]
        %v999 = vld [vmem:[#allocation12 + $0x48] sm:$0xff]
        %v1001 = vsel %vm830, %v989, 0
        %1003 = vmatpush.msra.mxu0 0.0
        %1004 = vmatpush.msra.mxu0 0.0
        %1005 = vmatpush.msra.mxu0 0.0
        %1006 = vmatpush.msra.mxu0 0.0
        %1007 = vmatpush.msra.mxu0 0.0
        %1008 = vmatpush.msra.mxu0 0.0
        %1009 = vmatpush.msra.mxu0 %v999
        %1010 = vmatpush.msra.mxu0 %v998
        %1011 = vmatpush.msra.mxu0 %v997
        %1012 = vmatpush.msra.mxu0 %v996
        %1013 = vmatpush.msra.mxu0 %v995
        %1014 = vmatpush.msra.mxu0 %v994
        %1015 = vmatpush.msra.mxu0 %v993
        %1016 = vmatpush.msra.mxu0 %v992
        %1017 = vmatpush.msra.mxu0 %v991
        %1018 = vmatpush.msra.mxu0 %v990
        %1019 = vmatmul.f32.gmra.mxu0 %v1001
        %v1020 = vpop.f32.mrf.mxu0
        %v1021 = vadd.f32 0.0, %v1020
        %1022 = vdwg.mxu0
        %v1023 = vld [vmem:[%s10] sm:$0x1]
        %v1025 = vperm.slane %v1023, 0
        %v1027 = vmul.f32 %v1021, %v1025
        %v1028 = vld [vmem:[%s11] sm:$0x1]
        %v1030 = vperm.slane %v1028, 0
        %v1032 = vadd.f32 %v1027, %v1030
        %v1033 = vmax.f32 %v1032, 0.0
        %1034 = vst.msk [vmem:[#allocation2] sm:$0xff] %vm938, 0.0
        %1035 = vst.msk [vmem:[#allocation2] sm:$0x3f] %vm964, 0.0
        %1037 = vrot.lane.b32.xlu0 %v1033, 16
        %v1038 = vpop.permute.xlu0 %1037
        %1040 = vst.msk [vmem:[#allocation2 + $0x6] sm:$0x3] %vm970, %v1038
        %1041 = vst.msk [vmem:[#allocation2] sm:$0xf] %vm972, 0.0
        %1042 = vrot.lane.b32.xlu0 %v1033, 32
        %v1043 = vpop.permute.xlu0 %1042
        %1045 = vst.msk [vmem:[#allocation2 + $0x4] sm:$0xf] %vm972, %v1043
        %1046 = vst.msk [vmem:[#allocation2] sm:$0x3] %vm978, 0.0
        %1047 = vrot.lane.b32.xlu0 %v1033, 48
        %v1048 = vpop.permute.xlu0 %1047
        %1050 = vst.msk [vmem:[#allocation2 + $0x2] sm:$0x3f] %vm983, %v1048
        %1051 = vrot.lane.b32.xlu0 %v1033, 64
        %v1052 = vpop.permute.xlu0 %1051
        %1054 = vst.msk [vmem:[#allocation2] sm:$0xff] %vm817, %v1052
        %v1055 = vld [vmem:[#allocation2] sm:$0xff]
        %v1056 = vld [vmem:[#allocation14] sm:$0xff]
        %v1057 = vld [vmem:[#allocation14 + $0x8] sm:$0xff]
        %v1058 = vld [vmem:[#allocation14 + $0x10] sm:$0xff]
        %v1059 = vld [vmem:[#allocation14 + $0x18] sm:$0xff]
        %v1060 = vld [vmem:[#allocation14 + $0x20] sm:$0xff]
        %v1061 = vld [vmem:[#allocation14 + $0x28] sm:$0xff]
        %v1062 = vld [vmem:[#allocation14 + $0x30] sm:$0xff]
        %v1063 = vld [vmem:[#allocation14 + $0x38] sm:$0xff]
        %v1064 = vld [vmem:[#allocation14 + $0x40] sm:$0xff]
        %v1065 = vld [vmem:[#allocation14 + $0x48] sm:$0xff]
        %v1067 = vsel %vm830, %v1055, 0
        %1069 = vmatpush.msra.mxu0 0.0
        %1070 = vmatpush.msra.mxu0 0.0
        %1071 = vmatpush.msra.mxu0 0.0
        %1072 = vmatpush.msra.mxu0 0.0
        %1073 = vmatpush.msra.mxu0 0.0
        %1074 = vmatpush.msra.mxu0 0.0
        %1075 = vmatpush.msra.mxu0 %v1065
        %1076 = vmatpush.msra.mxu0 %v1064
        %1077 = vmatpush.msra.mxu0 %v1063
        %1078 = vmatpush.msra.mxu0 %v1062
        %1079 = vmatpush.msra.mxu0 %v1061
        %1080 = vmatpush.msra.mxu0 %v1060
        %1081 = vmatpush.msra.mxu0 %v1059
        %1082 = vmatpush.msra.mxu0 %v1058
        %1083 = vmatpush.msra.mxu0 %v1057
        %1084 = vmatpush.msra.mxu0 %v1056
        %1085 = vmatmul.f32.gmra.mxu0 %v1067
        %v1086 = vpop.f32.mrf.mxu0
        %v1087 = vadd.f32 0.0, %v1086
        %1088 = vdwg.mxu0
        %v1089 = vld [vmem:[%s13] sm:$0x1]
        %v1091 = vperm.slane %v1089, 0
        %v1093 = vmul.f32 %v1087, %v1091
        %v1094 = vld [vmem:[%s14] sm:$0x1]
        %v1096 = vperm.slane %v1094, 0
        %v1098 = vadd.f32 %v1093, %v1096
        %v1099 = vmax.f32 %v1098, 0.0
        %v1100 = vld [vmem:[#allocation15] sm:$0xff]
        %v1101 = vld [vmem:[#allocation15 + $0x8] sm:$0xff]
        %v1102 = vld [vmem:[%s16] sm:$0x1]
        %v1104 = vperm.slane %v1102, 0
        %v1106 = vsel %vm938, %v962, 0
        %1108 = vmatpush.msra.mxu0 0.0
        %1109 = vmatpush.msra.mxu0 0.0
        %1110 = vmatpush.msra.mxu0 0.0
        %1111 = vmatpush.msra.mxu0 0.0
        %1112 = vmatpush.msra.mxu0 0.0
        %1113 = vmatpush.msra.mxu0 0.0
        %1114 = vmatpush.msra.mxu0 0.0
        %1115 = vmatpush.msra.mxu0 0.0
        %1116 = vmatpush.msra.mxu0 0.0
        %1117 = vmatpush.msra.mxu0 0.0
        %1118 = vmatpush.msra.mxu0 0.0
        %1119 = vmatpush.msra.mxu0 0.0
        %1120 = vmatpush.msra.mxu0 0.0
        %1121 = vmatpush.msra.mxu0 0.0
        %1122 = vmatpush.msra.mxu0 %v1101
        %1123 = vmatpush.msra.mxu0 %v1100
        %1124 = vmatmul.f32.gmra.mxu0 %v1106
        %v1125 = vpop.f32.mrf.mxu0
        %v1126 = vadd.f32 %v1104, %v1125
        %1127 = vdwg.mxu0
        %v1128 = vadd.f32 %v1099, %v1126
        %v1129 = vmax.f32 %v1128, 0.0
        %v1130 = vld [vmem:[#allocation17] sm:$0xff]
        %v1131 = vld [vmem:[#allocation17 + $0x8] sm:$0xff]
        %v1132 = vld [vmem:[%s18] sm:$0x1]
        %v1134 = vperm.slane %v1132, 0
        %v1137 = vsel %vm938, %v1129, 0
        %1139 = vmatpush.msra.mxu0 0.0
        %1140 = vmatpush.msra.mxu0 0.0
        %1141 = vmatpush.msra.mxu0 0.0
        %1142 = vmatpush.msra.mxu0 0.0
        %1143 = vmatpush.msra.mxu0 0.0
        %1144 = vmatpush.msra.mxu0 0.0
        %1145 = vmatpush.msra.mxu0 0.0
        %1146 = vmatpush.msra.mxu0 0.0
        %1147 = vmatpush.msra.mxu0 0.0
        %1148 = vmatpush.msra.mxu0 0.0
        %1149 = vmatpush.msra.mxu0 0.0
        %1150 = vmatpush.msra.mxu0 0.0
        %1151 = vmatpush.msra.mxu0 0.0
        %1152 = vmatpush.msra.mxu0 0.0
        %1153 = vmatpush.msra.mxu0 %v1131
        %1154 = vmatpush.msra.mxu0 %v1130
        %1155 = vmatmul.f32.gmra.mxu0 %v1137
        %v1156 = vpop.f32.mrf.mxu0
        %v1157 = vadd.f32 %v1134, %v1156
        %1158 = vdwg.mxu0
        %1159 = vst.msk [vmem:[%s780] sm:$0xff] %vm938, %v1157
        %1161 = vrot.lane.b32.xlu0 %v1157, 112
        %v1162 = vpop.permute.xlu0 %1161
        %vm1164 = vcmask 97280
        %1165 = vst.msk [vmem:[%s787] sm:$0xff] %vm1164, %v1162
        %s1166 = sand.u32 %s457, 1
        %s1167 = scalar_lea.sflag [#allocation5], %s1166
        %s1168 = sand.u32 %s457, 1
        %s1169 = smul.addr %s1168, 8
        %s1170 = scalar_lea.vmem [#allocation18], %s1169
        %s1171 = sand.u32 %s483, 1
        %s1172 = scalar_lea.sflag [#allocation20], %s1171
        %s1173 = sand.u32 %s483, 1
        %s1174 = smul.addr %s1173, 8
        %s1175 = scalar_lea.vmem [#allocation19], %s1174
        // Predicated region
        $region133: #{_lambda_.1} parent=95 // pred_check
          %p1176 = pneg %p467
        $region134: #{_lambda_.1} parent=95 // pred_check_branch
          %1178 = sbr.rel (%p1176) target = $region136
        $region135: #{_lambda_.1} parent=95 // pred_region
          %1180 = vsyncadd %s1167, 0
          %s1181 = smul.addr %s45, 8
          %s1182 = scalar_lea.hbm %s19, %s1181
          %s1184 = sshll.u32 %s1170, 4
          %s1185 = int_to_ptr.vmem [resolvable:$true] %s1184
          %s1186 = sshll.u32 %s1182, 4
          %s1187 = int_to_ptr.hbm [resolvable:$true] %s1186
          %1189 = dma.vmem_to_hbm [thread:$0]  %s1185, 128, %s1187, %s1167
        $region136: #{_lambda_.1} parent=95 // pred_fallthru
          _
        // Predicated region
        $region137: #{_lambda_.1} parent=95 // pred_check
          %p1190 = pneg %p493
        $region138: #{_lambda_.1} parent=95 // pred_check_branch
          %1192 = sbr.rel (%p1190) target = $region140
        $region139: #{_lambda_.1} parent=95 // pred_region
          %1194 = vsyncadd %s1172, 0
          %s1195 = smul.addr %s45, 8
          %s1196 = scalar_lea.hbm %s20, %s1195
          %s1198 = sshll.u32 %s1175, 4
          %s1199 = int_to_ptr.vmem [resolvable:$true] %s1198
          %s1200 = sshll.u32 %s1196, 4
          %s1201 = int_to_ptr.hbm [resolvable:$true] %s1200
          %1203 = dma.vmem_to_hbm [thread:$0]  %s1199, 128, %s1201, %s1172
        $region140: #{_lambda_.1} parent=95 // pred_fallthru
          _
      $region96: #{_lambda_.1} parent=5 // pred_fallthru
        _
      %p1204 = scmp.le.s32.totalorder 2, %s40
      // Predicated region
      $region141: #{_lambda_.1} parent=5 // pred_check
        %p1205 = pneg %p1204
      $region142: #{_lambda_.1} parent=5 // pred_check_branch
        %1207 = sbr.rel (%p1205) target = $region144
      $region143: #{_lambda_.1} parent=5 // pred_region
        %s1208 = ssub.s32 %s40, 2
        // Predicated region
        $region145: #{_lambda_.1} parent=143 // pred_check
          %p1209 = pneg %p473
        $region146: #{_lambda_.1} parent=143 // pred_check_branch
          %1211 = sbr.rel (%p1209) target = $region148
        $region147: #{_lambda_.1} parent=143 // pred_region
          %s1212 = sand.u32 %s458, 1
          %s1213 = scalar_lea.sflag [#allocation5], %s1212
          %s1214 = sand.u32 %s458, 1
          %s1215 = smul.addr %s1214, 8
          %s1216 = scalar_lea.vmem [#allocation18], %s1215
          %1218 = dma.done %s1213, 128
        $region148: #{_lambda_.1} parent=143 // pred_fallthru
          _
        // Predicated region
        $region149: #{_lambda_.1} parent=143 // pred_check
          %p1219 = pneg %p499
        $region150: #{_lambda_.1} parent=143 // pred_check_branch
          %1221 = sbr.rel (%p1219) target = $region152
        $region151: #{_lambda_.1} parent=143 // pred_region
          %s1222 = sand.u32 %s484, 1
          %s1223 = scalar_lea.sflag [#allocation20], %s1222
          %s1224 = sand.u32 %s484, 1
          %s1225 = smul.addr %s1224, 8
          %s1226 = scalar_lea.vmem [#allocation19], %s1225
          %1228 = dma.done %s1223, 128
        $region152: #{_lambda_.1} parent=143 // pred_fallthru
          _
      $region144: #{_lambda_.1} parent=5 // pred_fallthru
        _
    $region6: #{_lambda_.1} parent=1 // loop_footer
      %s44 = sadd.s32 1, %s40
    $region7: #{_lambda_.1} parent=1 // loop_footer_branch
      %39 = sbr.rel target = $region3
    $region8: #{_lambda_.1} parent=1 // loop_exit
      _
    %1229 = vsyncpa [#allocation4], 1
    %s1230 = scalar_lea.sflag [#allocation4], 1
    %1231 = vsyncpa %s1230, 1
    %1232 = vsyncpa [#allocation7], 1
    %1233 = vsyncpa [#allocation10], 1
    %1234 = vsyncpa [#allocation13], 1
    %1235 = vsyncpa [#allocation16], 1
    %1236 = vsyncpa [#allocation5], 1
    %s1237 = scalar_lea.sflag [#allocation5], 1
    %1238 = vsyncpa %s1237, 1
    %1239 = vsyncpa [#allocation20], 1
    %s1240 = scalar_lea.sflag [#allocation20], 1
    %1241 = vsyncpa %s1240, 1

</llo_original>
